<compile_context>
chip_gen: v5e
topology: v5e:2x2
jax: 0.10.0
libtpu: 0.0.40
codegen_flags: <defaults>
</compile_context>

<pallas_src>
import functools

import jax
import jax.numpy as jnp
from jax import lax
from jax.experimental import pallas as pl
from jax.experimental.pallas import tpu as pltpu


def _layer_norm(x, w, b, eps=1e-5):
    mean = jnp.mean(x, axis=-1, keepdims=True)
    var = jnp.mean((x - mean) ** 2, axis=-1, keepdims=True)
    return (x - mean) * jax.lax.rsqrt(var + eps) * w + b


# x @ W^T for PyTorch Linear weights W[out, in]: contract last dim of x with dim 1 of W.
_DN_XWT = (((1,), (1,)), ((), ()))


def _transformer_block_kernel(
    val_ref, key_ref, qry_ref,                 # (L, E): bf16, bf16, f32   (one batch)
    inw_ref, inb_ref,                          # (3E, E) bf16, (1, 3E) f32
    outw_ref, outb_ref,                        # (E, E) bf16, (1, E) f32
    ln1w_ref, ln1b_ref, ln2w_ref, ln2b_ref,    # (1, E) f32 each
    w1_ref, b1_ref,                            # (H, E) bf16, (1, H) f32
    w2_ref, b2_ref,                            # (E, H) bf16, (1, E) f32
    o_ref,                                     # (L, E) f32
    ctx_ref,                                   # VMEM scratch (L, E) f32
    *, heads: int, embed: int,
):
    E = embed
    D = E // heads
    scale = 1.0 / (D ** 0.5)
    bf16 = jnp.bfloat16

    # nn.MultiheadAttention positional mapping in the original forward:
    #   attention(value, key, query) -> MHA(query=value_arg, key=key_arg, value=query_arg)
    q_in = val_ref[...]                        # (L, E) bf16 : MHA query
    k_in = key_ref[...]                        # (L, E) bf16 : MHA key
    v_src = qry_ref[...]                       # (L, E) f32  : MHA value + residual source

    inb = inb_ref[...]                         # (1, 3E) f32
    # Static ref slices (views) of the packed in-projection weight.
    wq = inw_ref[0:E, :]
    wk = inw_ref[E:2 * E, :]
    wv = inw_ref[2 * E:3 * E, :]

    # In-projections: x @ W^T + b, bf16 operands -> f32 accumulation on the MXU.
    Q = lax.dot_general(q_in, wq, _DN_XWT,
                        preferred_element_type=jnp.float32) + inb[:, 0:E]
    K = lax.dot_general(k_in, wk, _DN_XWT,
                        preferred_element_type=jnp.float32) + inb[:, E:2 * E]
    V = lax.dot_general(v_src.astype(bf16), wv, _DN_XWT,
                        preferred_element_type=jnp.float32) + inb[:, 2 * E:3 * E]
    Q = Q * scale                              # fold 1/sqrt(D) into Q once

    Qb, Kb, Vb = Q.astype(bf16), K.astype(bf16), V.astype(bf16)

    # Per-head attention; each head's context is written to its lane slot of the
    # VMEM scratch, then the out-projection is a single full-K dot below.
    for h in range(heads):                     # small static unroll (heads=4)
        hs = slice(h * D, (h + 1) * D)
        s = lax.dot_general(Qb[:, hs], Kb[:, hs], _DN_XWT,
                            preferred_element_type=jnp.float32)       # (L, L)
        s = s - jnp.max(s, axis=-1, keepdims=True)
        p = jnp.exp(s)
        p = p * pl.reciprocal(jnp.sum(p, axis=-1, keepdims=True), approx=True)
        ctx_ref[:, hs] = jnp.dot(p.astype(bf16), Vb[:, hs],
                                 preferred_element_type=jnp.float32)   # (L, D) f32

    # Single out-projection dot over the assembled (L, E) context.
    attn = lax.dot_general(ctx_ref[...].astype(bf16), outw_ref[...], _DN_XWT,
                           preferred_element_type=jnp.float32) + outb_ref[...]

    # Residual with the `query` forward argument, then LayerNorm1 (f32).
    x = _layer_norm(attn + v_src, ln1w_ref[...], ln1b_ref[...])

    # Feed-forward (bf16 MXU matmuls, f32 elementwise).
    h1 = lax.dot_general(x.astype(bf16), w1_ref[...], _DN_XWT,
                         preferred_element_type=jnp.float32) + b1_ref[...]
    h1 = jnp.maximum(h1, 0.0)
    ff = lax.dot_general(h1.astype(bf16), w2_ref[...], _DN_XWT,
                         preferred_element_type=jnp.float32) + b2_ref[...]

    out = _layer_norm(ff + x, ln2w_ref[...], ln2b_ref[...])
    o_ref[...] = out.astype(o_ref.dtype)       # one lane-dense (L, E) slab store


def transformer_block(value, key, query, params, *, heads):
    """value/key/query: [L, B, E] (PyTorch nn.MultiheadAttention layout). Returns [L, B, E]."""
    L, B, E = query.shape
    H = params["w1"].shape[0]  # forward_expansion * E
    bf16 = jnp.bfloat16

    # Batch-major layout so the grid can hand each step one contiguous, fully aligned
    # (L, E) tile per activation and store a lane-dense output block.
    # value/key go to bf16 (ideally they already arrive as bf16); query stays f32
    # because it feeds the residual / LayerNorm path.
    v_t = jnp.transpose(value, (1, 0, 2)).astype(bf16)   # (B, L, E) bf16
    k_t = jnp.transpose(key, (1, 0, 2)).astype(bf16)     # (B, L, E) bf16
    q_t = jnp.transpose(query, (1, 0, 2))                # (B, L, E) f32

    def act_spec():
        # Leading (batch) dim is squeezed: kernel sees an (L, E) ref per step.
        return pl.BlockSpec((None, L, E), lambda b: (b, 0, 0))

    def full(shape):
        zeros = (0,) * len(shape)
        # Constant index map -> block stays VMEM-resident across grid steps.
        return pl.BlockSpec(shape, lambda b: zeros)

    out = pl.pallas_call(
        functools.partial(_transformer_block_kernel, heads=heads, embed=E),
        out_shape=jax.ShapeDtypeStruct((B, L, E), query.dtype),
        grid_spec=pltpu.PrefetchScalarGridSpec(
            num_scalar_prefetch=0,
            grid=(B,),   # one batch per step; pipelined, parallel across TCs on v7x
            in_specs=[
                act_spec(), act_spec(), act_spec(),
                full((3 * E, E)), full((1, 3 * E)),
                full((E, E)), full((1, E)),
                full((1, E)), full((1, E)), full((1, E)), full((1, E)),
                full((H, E)), full((1, H)),
                full((E, H)), full((1, E)),
            ],
            out_specs=pl.BlockSpec((None, L, E), lambda b: (b, 0, 0)),
            scratch_shapes=[pltpu.VMEM((L, E), jnp.float32)],   # per-step context
        ),
        compiler_params=pltpu.CompilerParams(
            dimension_semantics=("parallel",),
            vmem_limit_bytes=32 * 1024 * 1024,   # above v5e's 16 MiB default scoped limit
        ),
    )(
        v_t, k_t, q_t,
        params["in_proj_w"], params["in_proj_b"],
        params["out_w"], params["out_b"],
        params["ln1_w"], params["ln1_b"], params["ln2_w"], params["ln2_b"],
        params["w1"], params["b1"],
        params["w2"], params["b2"],
    )
    return jnp.transpose(out, (1, 0, 2))   # back to [L, B, E]


def reference_block(value, key, query, params, *, heads):
    """Pure-JAX f32 reference (same semantics), for correctness checking."""
    L, B, E = query.shape
    D = E // heads
    f32 = jnp.float32
    # Positional mapping into MHA (query<-value arg, key<-key arg, value<-query arg).
    q_in, k_in, v_in = value.astype(f32), key.astype(f32), query.astype(f32)

    def lin(x, w, b):
        return jnp.einsum("lbe,fe->lbf", x, w.astype(f32)) + b

    inw, inb = params["in_proj_w"], params["in_proj_b"][0]
    Q = lin(q_in, inw[0:E], inb[0:E])
    K = lin(k_in, inw[E:2 * E], inb[E:2 * E])
    V = lin(v_in, inw[2 * E:], inb[2 * E:])

    def split(x):  # [L, B, E] -> [B, heads, L, D]
        return jnp.transpose(x.reshape(L, B, heads, D), (1, 2, 0, 3))

    Qh, Kh, Vh = split(Q), split(K), split(V)
    s = jnp.einsum("bhqd,bhkd->bhqk", Qh, Kh) / (D ** 0.5)
    p = jax.nn.softmax(s, axis=-1)
    ctx = jnp.einsum("bhqk,bhkd->bhqd", p, Vh)
    ctx = jnp.transpose(ctx, (2, 0, 1, 3)).reshape(L, B, E)
    attn = lin(ctx, params["out_w"], params["out_b"][0])

    def ln(x, w, b, eps=1e-5):
        m = x.mean(-1, keepdims=True)
        v = ((x - m) ** 2).mean(-1, keepdims=True)
        return (x - m) / jnp.sqrt(v + eps) * w[0] + b[0]

    x = ln(attn + query.astype(f32), params["ln1_w"], params["ln1_b"])
    h1 = jnp.maximum(lin(x, params["w1"], params["b1"][0]), 0.0)
    ff = lin(h1, params["w2"], params["b2"][0])
    return ln(ff + x, params["ln2_w"], params["ln2_b"])


def init_params(rng, embed_dim, forward_expansion):
    E = embed_dim
    H = forward_expansion * E
    keys = jax.random.split(rng, 6)
    s = 0.02
    bf16 = jnp.bfloat16
    # MXU weights are pre-cast to bf16 ONCE here (not per call inside the wrapper);
    # biases and LayerNorm params stay f32.
    return {
        "in_proj_w": (s * jax.random.normal(keys[0], (3 * E, E), jnp.float32)).astype(bf16),
        "in_proj_b": s * jax.random.normal(keys[1], (1, 3 * E), jnp.float32),
        "out_w": (s * jax.random.normal(keys[2], (E, E), jnp.float32)).astype(bf16),
        "out_b": jnp.zeros((1, E), jnp.float32),
        "ln1_w": jnp.ones((1, E), jnp.float32),
        "ln1_b": jnp.zeros((1, E), jnp.float32),
        "ln2_w": jnp.ones((1, E), jnp.float32),
        "ln2_b": jnp.zeros((1, E), jnp.float32),
        "w1": (s * jax.random.normal(keys[3], (H, E), jnp.float32)).astype(bf16),
        "b1": s * jax.random.normal(keys[4], (1, H), jnp.float32),
        "w2": (s * jax.random.normal(keys[5], (E, H), jnp.float32)).astype(bf16),
        "b2": jnp.zeros((1, E), jnp.float32),
    }


if __name__ == "__main__":
    L, B, E = 8, 2, 32          # seq, batch, embed_dim
    heads = 4
    forward_expansion = 4

    root = jax.random.PRNGKey(0)
    kp, kv, kk, kq = jax.random.split(root, 4)
    params = init_params(kp, E, forward_expansion)

    # PyTorch MHA layout: [L, B, E]. value/key arrive as bf16 (kernel input dtype);
    # query stays f32 (residual / LayerNorm source).
    value = jax.random.normal(kv, (L, B, E), jnp.float32).astype(jnp.bfloat16)
    key = jax.random.normal(kk, (L, B, E), jnp.float32).astype(jnp.bfloat16)
    query = jax.random.normal(kq, (L, B, E), jnp.float32)

    out = transformer_block(value, key, query, params, heads=heads)
    out = jax.block_until_ready(out)

    ref = reference_block(value, key, query, params, heads=heads)
    assert out.shape == (L, B, E)
    assert jnp.allclose(out, ref, atol=2e-2, rtol=2e-2), "mismatch vs JAX reference"

    print("KERNEL_OK")
</pallas_src>

<mosaic_0001>
module attributes {stable_mosaic.version = 11 : i64} {
  func.func @_transformer_block_kernel(%arg0: i32, %arg1: memref<1x8x32xbf16, #tpu.memory_space<vmem>>, %arg2: memref<1x8x32xbf16, #tpu.memory_space<vmem>>, %arg3: memref<1x8x32xf32, #tpu.memory_space<vmem>>, %arg4: memref<96x32xbf16, #tpu.memory_space<vmem>>, %arg5: memref<1x96xf32, #tpu.memory_space<vmem>>, %arg6: memref<32x32xbf16, #tpu.memory_space<vmem>>, %arg7: memref<1x32xf32, #tpu.memory_space<vmem>>, %arg8: memref<1x32xf32, #tpu.memory_space<vmem>>, %arg9: memref<1x32xf32, #tpu.memory_space<vmem>>, %arg10: memref<1x32xf32, #tpu.memory_space<vmem>>, %arg11: memref<1x32xf32, #tpu.memory_space<vmem>>, %arg12: memref<128x32xbf16, #tpu.memory_space<vmem>>, %arg13: memref<1x128xf32, #tpu.memory_space<vmem>>, %arg14: memref<32x128xbf16, #tpu.memory_space<vmem>>, %arg15: memref<1x32xf32, #tpu.memory_space<vmem>>, %arg16: memref<1x8x32xf32, #tpu.memory_space<vmem>>, %arg17: memref<8x32xf32, #tpu.memory_space<vmem>>) attributes {dimension_semantics = [#tpu.dimension_semantics<parallel>], iteration_bounds = array<i64: 2>, scalar_prefetch = 0 : i64, scratch_operands = 1 : i64, tpu.core_type = #tpu.core_type<tc>, window_params = [{transform_indices = @transform_0, window_bounds = array<i64: 1, 8, 32>}, {transform_indices = @transform_1, window_bounds = array<i64: 1, 8, 32>}, {transform_indices = @transform_2, window_bounds = array<i64: 1, 8, 32>}, {pipeline_mode = #tpu.pipeline_mode<synchronous>, transform_indices = @transform_3, window_bounds = array<i64: 96, 32>}, {pipeline_mode = #tpu.pipeline_mode<synchronous>, transform_indices = @transform_4, window_bounds = array<i64: 1, 96>}, {pipeline_mode = #tpu.pipeline_mode<synchronous>, transform_indices = @transform_5, window_bounds = array<i64: 32, 32>}, {pipeline_mode = #tpu.pipeline_mode<synchronous>, transform_indices = @transform_6, window_bounds = array<i64: 1, 32>}, {pipeline_mode = #tpu.pipeline_mode<synchronous>, transform_indices = @transform_7, window_bounds = array<i64: 1, 32>}, {pipeline_mode = #tpu.pipeline_mode<synchronous>, transform_indices = @transform_8, window_bounds = array<i64: 1, 32>}, {pipeline_mode = #tpu.pipeline_mode<synchronous>, transform_indices = @transform_9, window_bounds = array<i64: 1, 32>}, {pipeline_mode = #tpu.pipeline_mode<synchronous>, transform_indices = @transform_10, window_bounds = array<i64: 1, 32>}, {pipeline_mode = #tpu.pipeline_mode<synchronous>, transform_indices = @transform_11, window_bounds = array<i64: 128, 32>}, {pipeline_mode = #tpu.pipeline_mode<synchronous>, transform_indices = @transform_12, window_bounds = array<i64: 1, 128>}, {pipeline_mode = #tpu.pipeline_mode<synchronous>, transform_indices = @transform_13, window_bounds = array<i64: 32, 128>}, {pipeline_mode = #tpu.pipeline_mode<synchronous>, transform_indices = @transform_14, window_bounds = array<i64: 1, 32>}, {transform_indices = @transform_15, window_bounds = array<i64: 1, 8, 32>}]} {
    %c0 = arith.constant 0 : index
    %c0_0 = arith.constant 0 : index
    %c0_1 = arith.constant 0 : index
    %0 = vector.load %arg1[%c0, %c0_0, %c0_1] : memref<1x8x32xbf16, #tpu.memory_space<vmem>>, vector<1x8x32xbf16>
    %1 = vector.shape_cast %0 : vector<1x8x32xbf16> to vector<8x32xbf16>
    %c0_2 = arith.constant 0 : index
    %c0_3 = arith.constant 0 : index
    %c0_4 = arith.constant 0 : index
    %2 = vector.load %arg2[%c0_2, %c0_3, %c0_4] : memref<1x8x32xbf16, #tpu.memory_space<vmem>>, vector<1x8x32xbf16>
    %3 = vector.shape_cast %2 : vector<1x8x32xbf16> to vector<8x32xbf16>
    %c0_5 = arith.constant 0 : index
    %c0_6 = arith.constant 0 : index
    %c0_7 = arith.constant 0 : index
    %4 = vector.load %arg3[%c0_5, %c0_6, %c0_7] : memref<1x8x32xf32, #tpu.memory_space<vmem>>, vector<1x8x32xf32>
    %5 = vector.shape_cast %4 : vector<1x8x32xf32> to vector<8x32xf32>
    %c0_8 = arith.constant 0 : index
    %c0_9 = arith.constant 0 : index
    %6 = vector.load %arg5[%c0_8, %c0_9] : memref<1x96xf32, #tpu.memory_space<vmem>>, vector<1x96xf32>
    %c0_10 = arith.constant 0 : index
    %c0_11 = arith.constant 0 : index
    %7 = vector.load %arg4[%c0_10, %c0_11] : memref<96x32xbf16, #tpu.memory_space<vmem>>, vector<32x32xbf16>
    %c32 = arith.constant 32 : index
    %c0_12 = arith.constant 0 : index
    %8 = vector.load %arg4[%c32, %c0_12] : memref<96x32xbf16, #tpu.memory_space<vmem>>, vector<32x32xbf16>
    %c64 = arith.constant 64 : index
    %c0_13 = arith.constant 0 : index
    %9 = vector.load %arg4[%c64, %c0_13] : memref<96x32xbf16, #tpu.memory_space<vmem>>, vector<32x32xbf16>
    %cst = arith.constant dense<0.000000e+00> : vector<8x32xf32>
    %10 = tpu.matmul %1, %7, %cst {dimension_numbers = #tpu.dot_dimension_numbers<[1], [1], [0], [0], [0, 0, 1, 0], [], []>} : vector<8x32xbf16>, vector<32x32xbf16>, vector<8x32xf32> -> vector<8x32xf32>
    %11 = vector.extract_strided_slice %6 {offsets = [0, 0], sizes = [1, 32], strides = [1, 1]} : vector<1x96xf32> to vector<1x32xf32>
    %12 = vector.broadcast %11 : vector<1x32xf32> to vector<8x32xf32>
    %13 = arith.addf %10, %12 : vector<8x32xf32>
    %cst_14 = arith.constant dense<0.000000e+00> : vector<8x32xf32>
    %14 = tpu.matmul %3, %8, %cst_14 {dimension_numbers = #tpu.dot_dimension_numbers<[1], [1], [0], [0], [0, 0, 1, 0], [], []>} : vector<8x32xbf16>, vector<32x32xbf16>, vector<8x32xf32> -> vector<8x32xf32>
    %15 = vector.extract_strided_slice %6 {offsets = [0, 32], sizes = [1, 32], strides = [1, 1]} : vector<1x96xf32> to vector<1x32xf32>
    %16 = vector.broadcast %15 : vector<1x32xf32> to vector<8x32xf32>
    %17 = arith.addf %14, %16 : vector<8x32xf32>
    %18 = arith.truncf %5 : vector<8x32xf32> to vector<8x32xbf16>
    %cst_15 = arith.constant dense<0.000000e+00> : vector<8x32xf32>
    %19 = tpu.matmul %18, %9, %cst_15 {dimension_numbers = #tpu.dot_dimension_numbers<[1], [1], [0], [0], [0, 0, 1, 0], [], []>} : vector<8x32xbf16>, vector<32x32xbf16>, vector<8x32xf32> -> vector<8x32xf32>
    %20 = vector.extract_strided_slice %6 {offsets = [0, 64], sizes = [1, 32], strides = [1, 1]} : vector<1x96xf32> to vector<1x32xf32>
    %21 = vector.broadcast %20 : vector<1x32xf32> to vector<8x32xf32>
    %22 = arith.addf %19, %21 : vector<8x32xf32>
    %cst_16 = arith.constant 0.353553385 : f32
    %23 = vector.broadcast %cst_16 : f32 to vector<8x32xf32>
    %24 = arith.mulf %13, %23 : vector<8x32xf32>
    %25 = arith.truncf %24 : vector<8x32xf32> to vector<8x32xbf16>
    %26 = arith.truncf %17 : vector<8x32xf32> to vector<8x32xbf16>
    %27 = arith.truncf %22 : vector<8x32xf32> to vector<8x32xbf16>
    %28 = vector.extract_strided_slice %25 {offsets = [0, 0], sizes = [8, 8], strides = [1, 1]} : vector<8x32xbf16> to vector<8x8xbf16>
    %29 = vector.extract_strided_slice %26 {offsets = [0, 0], sizes = [8, 8], strides = [1, 1]} : vector<8x32xbf16> to vector<8x8xbf16>
    %cst_17 = arith.constant dense<0.000000e+00> : vector<8x8xf32>
    %30 = tpu.matmul %28, %29, %cst_17 {dimension_numbers = #tpu.dot_dimension_numbers<[1], [1], [0], [0], [0, 0, 1, 0], [], []>} : vector<8x8xbf16>, vector<8x8xbf16>, vector<8x8xf32> -> vector<8x8xf32>
    %cst_18 = arith.constant dense<0xFF800000> : vector<8xf32>
    %31 = vector.multi_reduction <maximumf>, %30, %cst_18 [1] : vector<8x8xf32> to vector<8xf32>
    %32 = vector.shape_cast %31 : vector<8xf32> to vector<8x1xf32>
    %33 = vector.broadcast %32 : vector<8x1xf32> to vector<8x8xf32>
    %34 = arith.subf %30, %33 : vector<8x8xf32>
    %35 = math.exp %34 : vector<8x8xf32>
    %cst_19 = arith.constant dense<0.000000e+00> : vector<8xf32>
    %36 = vector.multi_reduction <add>, %35, %cst_19 [1] : vector<8x8xf32> to vector<8xf32>
    %37 = vector.shape_cast %36 : vector<8xf32> to vector<8x1xf32>
    %38 = tpu.reciprocal %37 {approx = true} : vector<8x1xf32> -> vector<8x1xf32>
    %39 = vector.broadcast %38 : vector<8x1xf32> to vector<8x8xf32>
    %40 = arith.mulf %35, %39 : vector<8x8xf32>
    %41 = arith.truncf %40 : vector<8x8xf32> to vector<8x8xbf16>
    %42 = vector.extract_strided_slice %27 {offsets = [0, 0], sizes = [8, 8], strides = [1, 1]} : vector<8x32xbf16> to vector<8x8xbf16>
    %cst_20 = arith.constant dense<0.000000e+00> : vector<8x8xf32>
    %43 = tpu.matmul %41, %42, %cst_20 {dimension_numbers = #tpu.dot_dimension_numbers<[1], [0], [0], [1], [0, 0, 1, 1], [], []>} : vector<8x8xbf16>, vector<8x8xbf16>, vector<8x8xf32> -> vector<8x8xf32>
    %c0_21 = arith.constant 0 : index
    %c0_22 = arith.constant 0 : index
    %44 = vector.load %arg17[%c0_21, %c0_22] : memref<8x32xf32, #tpu.memory_space<vmem>>, vector<8x8xf32>
    tpu.vector_store %arg17[%c0_21, %c0_22], %43 {strides = array<i32>} : memref<8x32xf32, #tpu.memory_space<vmem>>, vector<8x8xf32>,
    %45 = vector.extract_strided_slice %25 {offsets = [0, 8], sizes = [8, 8], strides = [1, 1]} : vector<8x32xbf16> to vector<8x8xbf16>
    %46 = vector.extract_strided_slice %26 {offsets = [0, 8], sizes = [8, 8], strides = [1, 1]} : vector<8x32xbf16> to vector<8x8xbf16>
    %cst_23 = arith.constant dense<0.000000e+00> : vector<8x8xf32>
    %47 = tpu.matmul %45, %46, %cst_23 {dimension_numbers = #tpu.dot_dimension_numbers<[1], [1], [0], [0], [0, 0, 1, 0], [], []>} : vector<8x8xbf16>, vector<8x8xbf16>, vector<8x8xf32> -> vector<8x8xf32>
    %cst_24 = arith.constant dense<0xFF800000> : vector<8xf32>
    %48 = vector.multi_reduction <maximumf>, %47, %cst_24 [1] : vector<8x8xf32> to vector<8xf32>
    %49 = vector.shape_cast %48 : vector<8xf32> to vector<8x1xf32>
    %50 = vector.broadcast %49 : vector<8x1xf32> to vector<8x8xf32>
    %51 = arith.subf %47, %50 : vector<8x8xf32>
    %52 = math.exp %51 : vector<8x8xf32>
    %cst_25 = arith.constant dense<0.000000e+00> : vector<8xf32>
    %53 = vector.multi_reduction <add>, %52, %cst_25 [1] : vector<8x8xf32> to vector<8xf32>
    %54 = vector.shape_cast %53 : vector<8xf32> to vector<8x1xf32>
    %55 = tpu.reciprocal %54 {approx = true} : vector<8x1xf32> -> vector<8x1xf32>
    %56 = vector.broadcast %55 : vector<8x1xf32> to vector<8x8xf32>
    %57 = arith.mulf %52, %56 : vector<8x8xf32>
    %58 = arith.truncf %57 : vector<8x8xf32> to vector<8x8xbf16>
    %59 = vector.extract_strided_slice %27 {offsets = [0, 8], sizes = [8, 8], strides = [1, 1]} : vector<8x32xbf16> to vector<8x8xbf16>
    %cst_26 = arith.constant dense<0.000000e+00> : vector<8x8xf32>
    %60 = tpu.matmul %58, %59, %cst_26 {dimension_numbers = #tpu.dot_dimension_numbers<[1], [0], [0], [1], [0, 0, 1, 1], [], []>} : vector<8x8xbf16>, vector<8x8xbf16>, vector<8x8xf32> -> vector<8x8xf32>
    %c0_27 = arith.constant 0 : index
    %c8 = arith.constant 8 : index
    %61 = vector.load %arg17[%c0_27, %c8] : memref<8x32xf32, #tpu.memory_space<vmem>>, vector<8x8xf32>
    tpu.vector_store %arg17[%c0_27, %c8], %60 {strides = array<i32>} : memref<8x32xf32, #tpu.memory_space<vmem>>, vector<8x8xf32>,
    %62 = vector.extract_strided_slice %25 {offsets = [0, 16], sizes = [8, 8], strides = [1, 1]} : vector<8x32xbf16> to vector<8x8xbf16>
    %63 = vector.extract_strided_slice %26 {offsets = [0, 16], sizes = [8, 8], strides = [1, 1]} : vector<8x32xbf16> to vector<8x8xbf16>
    %cst_28 = arith.constant dense<0.000000e+00> : vector<8x8xf32>
    %64 = tpu.matmul %62, %63, %cst_28 {dimension_numbers = #tpu.dot_dimension_numbers<[1], [1], [0], [0], [0, 0, 1, 0], [], []>} : vector<8x8xbf16>, vector<8x8xbf16>, vector<8x8xf32> -> vector<8x8xf32>
    %cst_29 = arith.constant dense<0xFF800000> : vector<8xf32>
    %65 = vector.multi_reduction <maximumf>, %64, %cst_29 [1] : vector<8x8xf32> to vector<8xf32>
    %66 = vector.shape_cast %65 : vector<8xf32> to vector<8x1xf32>
    %67 = vector.broadcast %66 : vector<8x1xf32> to vector<8x8xf32>
    %68 = arith.subf %64, %67 : vector<8x8xf32>
    %69 = math.exp %68 : vector<8x8xf32>
    %cst_30 = arith.constant dense<0.000000e+00> : vector<8xf32>
    %70 = vector.multi_reduction <add>, %69, %cst_30 [1] : vector<8x8xf32> to vector<8xf32>
    %71 = vector.shape_cast %70 : vector<8xf32> to vector<8x1xf32>
    %72 = tpu.reciprocal %71 {approx = true} : vector<8x1xf32> -> vector<8x1xf32>
    %73 = vector.broadcast %72 : vector<8x1xf32> to vector<8x8xf32>
    %74 = arith.mulf %69, %73 : vector<8x8xf32>
    %75 = arith.truncf %74 : vector<8x8xf32> to vector<8x8xbf16>
    %76 = vector.extract_strided_slice %27 {offsets = [0, 16], sizes = [8, 8], strides = [1, 1]} : vector<8x32xbf16> to vector<8x8xbf16>
    %cst_31 = arith.constant dense<0.000000e+00> : vector<8x8xf32>
    %77 = tpu.matmul %75, %76, %cst_31 {dimension_numbers = #tpu.dot_dimension_numbers<[1], [0], [0], [1], [0, 0, 1, 1], [], []>} : vector<8x8xbf16>, vector<8x8xbf16>, vector<8x8xf32> -> vector<8x8xf32>
    %c0_32 = arith.constant 0 : index
    %c16 = arith.constant 16 : index
    %78 = vector.load %arg17[%c0_32, %c16] : memref<8x32xf32, #tpu.memory_space<vmem>>, vector<8x8xf32>
    tpu.vector_store %arg17[%c0_32, %c16], %77 {strides = array<i32>} : memref<8x32xf32, #tpu.memory_space<vmem>>, vector<8x8xf32>,
    %79 = vector.extract_strided_slice %25 {offsets = [0, 24], sizes = [8, 8], strides = [1, 1]} : vector<8x32xbf16> to vector<8x8xbf16>
    %80 = vector.extract_strided_slice %26 {offsets = [0, 24], sizes = [8, 8], strides = [1, 1]} : vector<8x32xbf16> to vector<8x8xbf16>
    %cst_33 = arith.constant dense<0.000000e+00> : vector<8x8xf32>
    %81 = tpu.matmul %79, %80, %cst_33 {dimension_numbers = #tpu.dot_dimension_numbers<[1], [1], [0], [0], [0, 0, 1, 0], [], []>} : vector<8x8xbf16>, vector<8x8xbf16>, vector<8x8xf32> -> vector<8x8xf32>
    %cst_34 = arith.constant dense<0xFF800000> : vector<8xf32>
    %82 = vector.multi_reduction <maximumf>, %81, %cst_34 [1] : vector<8x8xf32> to vector<8xf32>
    %83 = vector.shape_cast %82 : vector<8xf32> to vector<8x1xf32>
    %84 = vector.broadcast %83 : vector<8x1xf32> to vector<8x8xf32>
    %85 = arith.subf %81, %84 : vector<8x8xf32>
    %86 = math.exp %85 : vector<8x8xf32>
    %cst_35 = arith.constant dense<0.000000e+00> : vector<8xf32>
    %87 = vector.multi_reduction <add>, %86, %cst_35 [1] : vector<8x8xf32> to vector<8xf32>
    %88 = vector.shape_cast %87 : vector<8xf32> to vector<8x1xf32>
    %89 = tpu.reciprocal %88 {approx = true} : vector<8x1xf32> -> vector<8x1xf32>
    %90 = vector.broadcast %89 : vector<8x1xf32> to vector<8x8xf32>
    %91 = arith.mulf %86, %90 : vector<8x8xf32>
    %92 = arith.truncf %91 : vector<8x8xf32> to vector<8x8xbf16>
    %93 = vector.extract_strided_slice %27 {offsets = [0, 24], sizes = [8, 8], strides = [1, 1]} : vector<8x32xbf16> to vector<8x8xbf16>
    %cst_36 = arith.constant dense<0.000000e+00> : vector<8x8xf32>
    %94 = tpu.matmul %92, %93, %cst_36 {dimension_numbers = #tpu.dot_dimension_numbers<[1], [0], [0], [1], [0, 0, 1, 1], [], []>} : vector<8x8xbf16>, vector<8x8xbf16>, vector<8x8xf32> -> vector<8x8xf32>
    %c0_37 = arith.constant 0 : index
    %c24 = arith.constant 24 : index
    %95 = vector.load %arg17[%c0_37, %c24] : memref<8x32xf32, #tpu.memory_space<vmem>>, vector<8x8xf32>
    tpu.vector_store %arg17[%c0_37, %c24], %94 {strides = array<i32>} : memref<8x32xf32, #tpu.memory_space<vmem>>, vector<8x8xf32>,
    %c0_38 = arith.constant 0 : index
    %c0_39 = arith.constant 0 : index
    %96 = vector.load %arg17[%c0_38, %c0_39] : memref<8x32xf32, #tpu.memory_space<vmem>>, vector<8x32xf32>
    %97 = arith.truncf %96 : vector<8x32xf32> to vector<8x32xbf16>
    %c0_40 = arith.constant 0 : index
    %c0_41 = arith.constant 0 : index
    %98 = vector.load %arg6[%c0_40, %c0_41] : memref<32x32xbf16, #tpu.memory_space<vmem>>, vector<32x32xbf16>
    %cst_42 = arith.constant dense<0.000000e+00> : vector<8x32xf32>
    %99 = tpu.matmul %97, %98, %cst_42 {dimension_numbers = #tpu.dot_dimension_numbers<[1], [1], [0], [0], [0, 0, 1, 0], [], []>} : vector<8x32xbf16>, vector<32x32xbf16>, vector<8x32xf32> -> vector<8x32xf32>
    %c0_43 = arith.constant 0 : index
    %c0_44 = arith.constant 0 : index
    %100 = vector.load %arg7[%c0_43, %c0_44] : memref<1x32xf32, #tpu.memory_space<vmem>>, vector<1x32xf32>
    %101 = vector.broadcast %100 : vector<1x32xf32> to vector<8x32xf32>
    %102 = arith.addf %99, %101 : vector<8x32xf32>
    %103 = arith.addf %102, %5 : vector<8x32xf32>
    %c0_45 = arith.constant 0 : index
    %c0_46 = arith.constant 0 : index
    %104 = vector.load %arg8[%c0_45, %c0_46] : memref<1x32xf32, #tpu.memory_space<vmem>>, vector<1x32xf32>
    %c0_47 = arith.constant 0 : index
    %c0_48 = arith.constant 0 : index
    %105 = vector.load %arg9[%c0_47, %c0_48] : memref<1x32xf32, #tpu.memory_space<vmem>>, vector<1x32xf32>
    %cst_49 = arith.constant dense<0.000000e+00> : vector<8xf32>
    %106 = vector.multi_reduction <add>, %103, %cst_49 [1] : vector<8x32xf32> to vector<8xf32>
    %107 = vector.shape_cast %106 : vector<8xf32> to vector<8x1xf32>
    %cst_50 = arith.constant 3.200000e+01 : f32
    %108 = vector.broadcast %cst_50 : f32 to vector<8x1xf32>
    %109 = arith.divf %107, %108 : vector<8x1xf32>
    %110 = vector.broadcast %109 : vector<8x1xf32> to vector<8x32xf32>
    %111 = arith.subf %103, %110 : vector<8x32xf32>
    %112 = arith.mulf %111, %111 : vector<8x32xf32>
    %cst_51 = arith.constant dense<0.000000e+00> : vector<8xf32>
    %113 = vector.multi_reduction <add>, %112, %cst_51 [1] : vector<8x32xf32> to vector<8xf32>
    %114 = vector.shape_cast %113 : vector<8xf32> to vector<8x1xf32>
    %cst_52 = arith.constant 3.200000e+01 : f32
    %115 = vector.broadcast %cst_52 : f32 to vector<8x1xf32>
    %116 = arith.divf %114, %115 : vector<8x1xf32>
    %117 = vector.broadcast %109 : vector<8x1xf32> to vector<8x32xf32>
    %118 = arith.subf %103, %117 : vector<8x32xf32>
    %cst_53 = arith.constant 9.99999974E-6 : f32
    %119 = vector.broadcast %cst_53 : f32 to vector<8x1xf32>
    %120 = arith.addf %116, %119 : vector<8x1xf32>
    %121 = math.rsqrt %120 : vector<8x1xf32>
    %122 = vector.broadcast %121 : vector<8x1xf32> to vector<8x32xf32>
    %123 = arith.mulf %118, %122 : vector<8x32xf32>
    %124 = vector.broadcast %104 : vector<1x32xf32> to vector<8x32xf32>
    %125 = arith.mulf %123, %124 : vector<8x32xf32>
    %126 = vector.broadcast %105 : vector<1x32xf32> to vector<8x32xf32>
    %127 = arith.addf %125, %126 : vector<8x32xf32>
    %128 = arith.truncf %127 : vector<8x32xf32> to vector<8x32xbf16>
    %c0_54 = arith.constant 0 : index
    %c0_55 = arith.constant 0 : index
    %129 = vector.load %arg12[%c0_54, %c0_55] : memref<128x32xbf16, #tpu.memory_space<vmem>>, vector<128x32xbf16>
    %cst_56 = arith.constant dense<0.000000e+00> : vector<8x128xf32>
    %130 = tpu.matmul %128, %129, %cst_56 {dimension_numbers = #tpu.dot_dimension_numbers<[1], [1], [0], [0], [0, 0, 1, 0], [], []>} : vector<8x32xbf16>, vector<128x32xbf16>, vector<8x128xf32> -> vector<8x128xf32>
    %c0_57 = arith.constant 0 : index
    %c0_58 = arith.constant 0 : index
    %131 = vector.load %arg13[%c0_57, %c0_58] : memref<1x128xf32, #tpu.memory_space<vmem>>, vector<1x128xf32>
    %132 = vector.broadcast %131 : vector<1x128xf32> to vector<8x128xf32>
    %133 = arith.addf %130, %132 : vector<8x128xf32>
    %cst_59 = arith.constant 0.000000e+00 : f32
    %134 = vector.broadcast %cst_59 : f32 to vector<8x128xf32>
    %135 = arith.maximumf %133, %134 : vector<8x128xf32>
    %136 = arith.truncf %135 : vector<8x128xf32> to vector<8x128xbf16>
    %c0_60 = arith.constant 0 : index
    %c0_61 = arith.constant 0 : index
    %137 = vector.load %arg14[%c0_60, %c0_61] : memref<32x128xbf16, #tpu.memory_space<vmem>>, vector<32x128xbf16>
    %cst_62 = arith.constant dense<0.000000e+00> : vector<8x32xf32>
    %138 = tpu.matmul %136, %137, %cst_62 {dimension_numbers = #tpu.dot_dimension_numbers<[1], [1], [0], [0], [0, 0, 1, 0], [], []>} : vector<8x128xbf16>, vector<32x128xbf16>, vector<8x32xf32> -> vector<8x32xf32>
    %c0_63 = arith.constant 0 : index
    %c0_64 = arith.constant 0 : index
    %139 = vector.load %arg15[%c0_63, %c0_64] : memref<1x32xf32, #tpu.memory_space<vmem>>, vector<1x32xf32>
    %140 = vector.broadcast %139 : vector<1x32xf32> to vector<8x32xf32>
    %141 = arith.addf %138, %140 : vector<8x32xf32>
    %142 = arith.addf %141, %127 : vector<8x32xf32>
    %c0_65 = arith.constant 0 : index
    %c0_66 = arith.constant 0 : index
    %143 = vector.load %arg10[%c0_65, %c0_66] : memref<1x32xf32, #tpu.memory_space<vmem>>, vector<1x32xf32>
    %c0_67 = arith.constant 0 : index
    %c0_68 = arith.constant 0 : index
    %144 = vector.load %arg11[%c0_67, %c0_68] : memref<1x32xf32, #tpu.memory_space<vmem>>, vector<1x32xf32>
    %cst_69 = arith.constant dense<0.000000e+00> : vector<8xf32>
    %145 = vector.multi_reduction <add>, %142, %cst_69 [1] : vector<8x32xf32> to vector<8xf32>
    %146 = vector.shape_cast %145 : vector<8xf32> to vector<8x1xf32>
    %cst_70 = arith.constant 3.200000e+01 : f32
    %147 = vector.broadcast %cst_70 : f32 to vector<8x1xf32>
    %148 = arith.divf %146, %147 : vector<8x1xf32>
    %149 = vector.broadcast %148 : vector<8x1xf32> to vector<8x32xf32>
    %150 = arith.subf %142, %149 : vector<8x32xf32>
    %151 = arith.mulf %150, %150 : vector<8x32xf32>
    %cst_71 = arith.constant dense<0.000000e+00> : vector<8xf32>
    %152 = vector.multi_reduction <add>, %151, %cst_71 [1] : vector<8x32xf32> to vector<8xf32>
    %153 = vector.shape_cast %152 : vector<8xf32> to vector<8x1xf32>
    %cst_72 = arith.constant 3.200000e+01 : f32
    %154 = vector.broadcast %cst_72 : f32 to vector<8x1xf32>
    %155 = arith.divf %153, %154 : vector<8x1xf32>
    %156 = vector.broadcast %148 : vector<8x1xf32> to vector<8x32xf32>
    %157 = arith.subf %142, %156 : vector<8x32xf32>
    %cst_73 = arith.constant 9.99999974E-6 : f32
    %158 = vector.broadcast %cst_73 : f32 to vector<8x1xf32>
    %159 = arith.addf %155, %158 : vector<8x1xf32>
    %160 = math.rsqrt %159 : vector<8x1xf32>
    %161 = vector.broadcast %160 : vector<8x1xf32> to vector<8x32xf32>
    %162 = arith.mulf %157, %161 : vector<8x32xf32>
    %163 = vector.broadcast %143 : vector<1x32xf32> to vector<8x32xf32>
    %164 = arith.mulf %162, %163 : vector<8x32xf32>
    %165 = vector.broadcast %144 : vector<1x32xf32> to vector<8x32xf32>
    %166 = arith.addf %164, %165 : vector<8x32xf32>
    %c0_74 = arith.constant 0 : index
    %c0_75 = arith.constant 0 : index
    %c0_76 = arith.constant 0 : index
    %167 = vector.load %arg16[%c0_74, %c0_75, %c0_76] : memref<1x8x32xf32, #tpu.memory_space<vmem>>, vector<1x8x32xf32>
    %168 = vector.shape_cast %167 : vector<1x8x32xf32> to vector<8x32xf32>
    %169 = vector.shape_cast %166 : vector<8x32xf32> to vector<1x8x32xf32>
    tpu.vector_store %arg16[%c0_74, %c0_75, %c0_76], %169 {strides = array<i32>} : memref<1x8x32xf32, #tpu.memory_space<vmem>>, vector<1x8x32xf32>,
    return
  }
  func.func @transform_0(%arg0: i32) -> (i32, i32, i32) {
    %c0_i32 = arith.constant 0 : i32
    %c0_i32_0 = arith.constant 0 : i32
    %c0_i32_1 = arith.constant 0 : i32
    return %arg0, %c0_i32, %c0_i32_0 : i32, i32, i32
  }
  func.func @transform_1(%arg0: i32) -> (i32, i32, i32) {
    %c0_i32 = arith.constant 0 : i32
    %c0_i32_0 = arith.constant 0 : i32
    %c0_i32_1 = arith.constant 0 : i32
    return %arg0, %c0_i32, %c0_i32_0 : i32, i32, i32
  }
  func.func @transform_2(%arg0: i32) -> (i32, i32, i32) {
    %c0_i32 = arith.constant 0 : i32
    %c0_i32_0 = arith.constant 0 : i32
    %c0_i32_1 = arith.constant 0 : i32
    return %arg0, %c0_i32, %c0_i32_0 : i32, i32, i32
  }
  func.func @transform_3(%arg0: i32) -> (i32, i32) {
    %c0_i32 = arith.constant 0 : i32
    %c0_i32_0 = arith.constant 0 : i32
    %c0_i32_1 = arith.constant 0 : i32
    return %c0_i32, %c0_i32_0 : i32, i32
  }
  func.func @transform_4(%arg0: i32) -> (i32, i32) {
    %c0_i32 = arith.constant 0 : i32
    %c0_i32_0 = arith.constant 0 : i32
    %c0_i32_1 = arith.constant 0 : i32
    return %c0_i32, %c0_i32_0 : i32, i32
  }
  func.func @transform_5(%arg0: i32) -> (i32, i32) {
    %c0_i32 = arith.constant 0 : i32
    %c0_i32_0 = arith.constant 0 : i32
    %c0_i32_1 = arith.constant 0 : i32
    return %c0_i32, %c0_i32_0 : i32, i32
  }
  func.func @transform_6(%arg0: i32) -> (i32, i32) {
    %c0_i32 = arith.constant 0 : i32
    %c0_i32_0 = arith.constant 0 : i32
    %c0_i32_1 = arith.constant 0 : i32
    return %c0_i32, %c0_i32_0 : i32, i32
  }
  func.func @transform_7(%arg0: i32) -> (i32, i32) {
    %c0_i32 = arith.constant 0 : i32
    %c0_i32_0 = arith.constant 0 : i32
    %c0_i32_1 = arith.constant 0 : i32
    return %c0_i32, %c0_i32_0 : i32, i32
  }
  func.func @transform_8(%arg0: i32) -> (i32, i32) {
    %c0_i32 = arith.constant 0 : i32
    %c0_i32_0 = arith.constant 0 : i32
    %c0_i32_1 = arith.constant 0 : i32
    return %c0_i32, %c0_i32_0 : i32, i32
  }
  func.func @transform_9(%arg0: i32) -> (i32, i32) {
    %c0_i32 = arith.constant 0 : i32
    %c0_i32_0 = arith.constant 0 : i32
    %c0_i32_1 = arith.constant 0 : i32
    return %c0_i32, %c0_i32_0 : i32, i32
  }
  func.func @transform_10(%arg0: i32) -> (i32, i32) {
    %c0_i32 = arith.constant 0 : i32
    %c0_i32_0 = arith.constant 0 : i32
    %c0_i32_1 = arith.constant 0 : i32
    return %c0_i32, %c0_i32_0 : i32, i32
  }
  func.func @transform_11(%arg0: i32) -> (i32, i32) {
    %c0_i32 = arith.constant 0 : i32
    %c0_i32_0 = arith.constant 0 : i32
    %c0_i32_1 = arith.constant 0 : i32
    return %c0_i32, %c0_i32_0 : i32, i32
  }
  func.func @transform_12(%arg0: i32) -> (i32, i32) {
    %c0_i32 = arith.constant 0 : i32
    %c0_i32_0 = arith.constant 0 : i32
    %c0_i32_1 = arith.constant 0 : i32
    return %c0_i32, %c0_i32_0 : i32, i32
  }
  func.func @transform_13(%arg0: i32) -> (i32, i32) {
    %c0_i32 = arith.constant 0 : i32
    %c0_i32_0 = arith.constant 0 : i32
    %c0_i32_1 = arith.constant 0 : i32
    return %c0_i32, %c0_i32_0 : i32, i32
  }
  func.func @transform_14(%arg0: i32) -> (i32, i32) {
    %c0_i32 = arith.constant 0 : i32
    %c0_i32_0 = arith.constant 0 : i32
    %c0_i32_1 = arith.constant 0 : i32
    return %c0_i32, %c0_i32_0 : i32, i32
  }
  func.func @transform_15(%arg0: i32) -> (i32, i32, i32) {
    %c0_i32 = arith.constant 0 : i32
    %c0_i32_0 = arith.constant 0 : i32
    %c0_i32_1 = arith.constant 0 : i32
    return %arg0, %c0_i32, %c0_i32_0 : i32, i32, i32
  }
}

</mosaic_0001>

<llo_original>
// kernel: tpu_custom_call.1
$region0: #{tpu_custom_call.1}
  #allocation0 [shape = 'u32[]', space=smem, size = 0x4, offset = 0x4, fixed_abs, tag = 'smem constant byte address 0x4 - core index']
  #allocation1 [shape = 'u32[72,128]{1,0:T(1,128)}', space=vmem, size = 0x9000, scoped, tag = 'internal scratch']
  #allocation2 [shape = 'f32[8,32]{1,0:T(8,128)}', space=vmem, size = 0x1000, scoped, tag = 'scratch operand']
  %s0 = inlined_call_operand.vmem [shape: bf16[2,8,32], index: 0, kind: input, shape index: {}]
  %s1 = inlined_call_operand.vmem [shape: bf16[2,8,32], index: 1, kind: input, shape index: {}]
  %s2 = inlined_call_operand.vmem [shape: f32[2,8,32], index: 2, kind: input, shape index: {}]
  %s3 = inlined_call_operand.vmem [shape: bf16[96,32], index: 3, kind: input, shape index: {}]
  %s4 = inlined_call_operand.vmem [shape: f32[1,96], index: 4, kind: input, shape index: {}]
  %s5 = inlined_call_operand.vmem [shape: bf16[32,32], index: 5, kind: input, shape index: {}]
  %s6 = inlined_call_operand.vmem [shape: f32[1,32], index: 6, kind: input, shape index: {}]
  %s7 = inlined_call_operand.vmem [shape: f32[1,32], index: 7, kind: input, shape index: {}]
  %s8 = inlined_call_operand.vmem [shape: f32[1,32], index: 8, kind: input, shape index: {}]
  %s9 = inlined_call_operand.vmem [shape: f32[1,32], index: 9, kind: input, shape index: {}]
  %s10 = inlined_call_operand.vmem [shape: f32[1,32], index: 10, kind: input, shape index: {}]
  %s11 = inlined_call_operand.vmem [shape: bf16[128,32], index: 11, kind: input, shape index: {}]
  %s12 = inlined_call_operand.vmem [shape: f32[1,128], index: 12, kind: input, shape index: {}]
  %s13 = inlined_call_operand.vmem [shape: bf16[32,128], index: 13, kind: input, shape index: {}]
  %s14 = inlined_call_operand.vmem [shape: f32[1,32], index: 14, kind: input, shape index: {}]
  %s15 = inlined_call_operand.hbm [shape: f32[2,8,32], index: 15, kind: output, shape index: {}]
  %s16 = sld [smem:[#allocation0]]
  $region93: #{tpu_custom_call.1} parent=0
    _
  %s18 = ssub.s32 1, %s16
  %s19 = scalar_select 0, %s18, %s16
  $region1: #{tpu_custom_call.1} parent=0
    #allocation3 [shape = 'u8[8192]{0}', space=vmem, size = 0x2000, scoped, tag = 'output window, operand 0']
    #allocation4 [shape = 's32[2]{0}', space=sflag, size = 0x8, scoped, tag = 'scoped memory for tpu_custom_call.1']
    %20 = vsyncpa [#allocation4], 0
    %s21 = scalar_lea.sflag [#allocation4], 1
    %22 = vsyncpa %s21, 0
    loop: start=0, step=1, limit=4
    $region2: #{tpu_custom_call.1} parent=1 // loop_pre_header
      _
    $region3: #{tpu_custom_call.1} parent=1 // loop_header
      %s24 = sphi 0, %s28
      %p25 = scmp.ge.s32.totalorder %s24, 4
      %s34 = sphi 0, %s36
      %s37 = sphi 0, %s34
      %s38 = sphi 0, %s37
      %s54 = sphi 0, %s38
      %s60 = sphi 0, %s62
      %s63 = sphi 0, %s60
      %s64 = sphi 0, %s63
      %s80 = sphi 0, %s64
      %s86 = sphi 0, %s88
      %s89 = sphi 0, %s86
      %s90 = sphi 0, %s89
      %s106 = sphi 0, %s90
      %s110 = sphi 0, %s110
      %s112 = sphi 0, %s110
      %s113 = sphi 0, %s112
      %s127 = sphi 0, %s113
      %s131 = sphi 0, %s131
      %s133 = sphi 0, %s131
      %s134 = sphi 0, %s133
      %s148 = sphi 0, %s134
      %s152 = sphi 0, %s152
      %s154 = sphi 0, %s152
      %s155 = sphi 0, %s154
      %s169 = sphi 0, %s155
      %s173 = sphi 0, %s173
      %s175 = sphi 0, %s173
      %s176 = sphi 0, %s175
      %s190 = sphi 0, %s176
      %s194 = sphi 0, %s194
      %s196 = sphi 0, %s194
      %s197 = sphi 0, %s196
      %s211 = sphi 0, %s197
      %s215 = sphi 0, %s215
      %s217 = sphi 0, %s215
      %s218 = sphi 0, %s217
      %s232 = sphi 0, %s218
      %s236 = sphi 0, %s236
      %s238 = sphi 0, %s236
      %s239 = sphi 0, %s238
      %s253 = sphi 0, %s239
      %s257 = sphi 0, %s257
      %s259 = sphi 0, %s257
      %s260 = sphi 0, %s259
      %s274 = sphi 0, %s260
      %s278 = sphi 0, %s278
      %s280 = sphi 0, %s278
      %s281 = sphi 0, %s280
      %s295 = sphi 0, %s281
      %s299 = sphi 0, %s299
      %s301 = sphi 0, %s299
      %s302 = sphi 0, %s301
      %s316 = sphi 0, %s302
      %s320 = sphi 0, %s320
      %s322 = sphi 0, %s320
      %s323 = sphi 0, %s322
      %s337 = sphi 0, %s323
      %s341 = sphi 0, %s341
      %s343 = sphi 0, %s341
      %s344 = sphi 0, %s343
      %s358 = sphi 0, %s344
      %s364 = sphi 0, %s366
      %s367 = sphi 0, %s364
      %s368 = sphi 0, %s367
      %s384 = sphi 0, %s368
    $region4: #{tpu_custom_call.1} parent=1 // loop_header_branch
      %27 = sbr.rel (%p25) target = $region8
    $region5: #{tpu_custom_call.1} parent=1 // loop_body
      %s29 = ssub.s32 %s24, 1
      %s30 = ssub.s32 %s24, 2
      %s31 = sadd.s32 %s24, 1
      %s32 = ssub.s32 %s24, %s31
      %p33 = scmp.eq.s32.totalorder %s32, 0
      %s35 = sadd.s32 %s34, 1
      %s36 = scalar_select %p33, %s34, %s35
      %p39 = pneg %p33
      %p40 = scmp.eq.s32.totalorder %s24, 1
      %p41 = por %p39, %p40
      %p42 = scmp.ne.s32.totalorder %s34, %s37
      %p43 = scmp.eq.s32.totalorder %s24, 0
      %p44 = por %p42, %p43
      %p45 = scmp.ne.s32.totalorder %s34, %s37
      %p46 = scmp.eq.s32.totalorder %s29, 1
      %p47 = por %p45, %p46
      %p48 = scmp.ne.s32.totalorder %s37, %s38
      %p49 = scmp.eq.s32.totalorder %s29, 0
      %p50 = por %p48, %p49
      %p51 = scmp.ne.s32.totalorder %s37, %s38
      %p52 = scmp.eq.s32.totalorder %s30, 1
      %p53 = por %p51, %p52
      %p55 = scmp.ne.s32.totalorder %s38, %s54
      %p56 = scmp.eq.s32.totalorder %s30, 0
      %p57 = por %p55, %p56
      %s58 = ssub.s32 %s24, %s31
      %p59 = scmp.eq.s32.totalorder %s58, 0
      %s61 = sadd.s32 %s60, 1
      %s62 = scalar_select %p59, %s60, %s61
      %p65 = pneg %p59
      %p66 = scmp.eq.s32.totalorder %s24, 1
      %p67 = por %p65, %p66
      %p68 = scmp.ne.s32.totalorder %s60, %s63
      %p69 = scmp.eq.s32.totalorder %s24, 0
      %p70 = por %p68, %p69
      %p71 = scmp.ne.s32.totalorder %s60, %s63
      %p72 = scmp.eq.s32.totalorder %s29, 1
      %p73 = por %p71, %p72
      %p74 = scmp.ne.s32.totalorder %s63, %s64
      %p75 = scmp.eq.s32.totalorder %s29, 0
      %p76 = por %p74, %p75
      %p77 = scmp.ne.s32.totalorder %s63, %s64
      %p78 = scmp.eq.s32.totalorder %s30, 1
      %p79 = por %p77, %p78
      %p81 = scmp.ne.s32.totalorder %s64, %s80
      %p82 = scmp.eq.s32.totalorder %s30, 0
      %p83 = por %p81, %p82
      %s84 = ssub.s32 %s24, %s31
      %p85 = scmp.eq.s32.totalorder %s84, 0
      %s87 = sadd.s32 %s86, 1
      %s88 = scalar_select %p85, %s86, %s87
      %p91 = pneg %p85
      %p92 = scmp.eq.s32.totalorder %s24, 1
      %p93 = por %p91, %p92
      %p94 = scmp.ne.s32.totalorder %s86, %s89
      %p95 = scmp.eq.s32.totalorder %s24, 0
      %p96 = por %p94, %p95
      %p97 = scmp.ne.s32.totalorder %s86, %s89
      %p98 = scmp.eq.s32.totalorder %s29, 1
      %p99 = por %p97, %p98
      %p100 = scmp.ne.s32.totalorder %s89, %s90
      %p101 = scmp.eq.s32.totalorder %s29, 0
      %p102 = por %p100, %p101
      %p103 = scmp.ne.s32.totalorder %s89, %s90
      %p104 = scmp.eq.s32.totalorder %s30, 1
      %p105 = por %p103, %p104
      %p107 = scmp.ne.s32.totalorder %s90, %s106
      %p108 = scmp.eq.s32.totalorder %s30, 0
      %p109 = por %p107, %p108
      %s111 = sadd.s32 %s110, 1
      %p114 = scmp.eq.s32.totalorder %s24, 1
      %p115 = scmp.ne.s32.totalorder %s110, %s112
      %p116 = scmp.eq.s32.totalorder %s24, 0
      %p117 = por %p115, %p116
      %p118 = scmp.ne.s32.totalorder %s110, %s112
      %p119 = scmp.eq.s32.totalorder %s29, 1
      %p120 = por %p118, %p119
      %p121 = scmp.ne.s32.totalorder %s112, %s113
      %p122 = scmp.eq.s32.totalorder %s29, 0
      %p123 = por %p121, %p122
      %p124 = scmp.ne.s32.totalorder %s112, %s113
      %p125 = scmp.eq.s32.totalorder %s30, 1
      %p126 = por %p124, %p125
      %p128 = scmp.ne.s32.totalorder %s113, %s127
      %p129 = scmp.eq.s32.totalorder %s30, 0
      %p130 = por %p128, %p129
      %s132 = sadd.s32 %s131, 1
      %p135 = scmp.eq.s32.totalorder %s24, 1
      %p136 = scmp.ne.s32.totalorder %s131, %s133
      %p137 = scmp.eq.s32.totalorder %s24, 0
      %p138 = por %p136, %p137
      %p139 = scmp.ne.s32.totalorder %s131, %s133
      %p140 = scmp.eq.s32.totalorder %s29, 1
      %p141 = por %p139, %p140
      %p142 = scmp.ne.s32.totalorder %s133, %s134
      %p143 = scmp.eq.s32.totalorder %s29, 0
      %p144 = por %p142, %p143
      %p145 = scmp.ne.s32.totalorder %s133, %s134
      %p146 = scmp.eq.s32.totalorder %s30, 1
      %p147 = por %p145, %p146
      %p149 = scmp.ne.s32.totalorder %s134, %s148
      %p150 = scmp.eq.s32.totalorder %s30, 0
      %p151 = por %p149, %p150
      %s153 = sadd.s32 %s152, 1
      %p156 = scmp.eq.s32.totalorder %s24, 1
      %p157 = scmp.ne.s32.totalorder %s152, %s154
      %p158 = scmp.eq.s32.totalorder %s24, 0
      %p159 = por %p157, %p158
      %p160 = scmp.ne.s32.totalorder %s152, %s154
      %p161 = scmp.eq.s32.totalorder %s29, 1
      %p162 = por %p160, %p161
      %p163 = scmp.ne.s32.totalorder %s154, %s155
      %p164 = scmp.eq.s32.totalorder %s29, 0
      %p165 = por %p163, %p164
      %p166 = scmp.ne.s32.totalorder %s154, %s155
      %p167 = scmp.eq.s32.totalorder %s30, 1
      %p168 = por %p166, %p167
      %p170 = scmp.ne.s32.totalorder %s155, %s169
      %p171 = scmp.eq.s32.totalorder %s30, 0
      %p172 = por %p170, %p171
      %s174 = sadd.s32 %s173, 1
      %p177 = scmp.eq.s32.totalorder %s24, 1
      %p178 = scmp.ne.s32.totalorder %s173, %s175
      %p179 = scmp.eq.s32.totalorder %s24, 0
      %p180 = por %p178, %p179
      %p181 = scmp.ne.s32.totalorder %s173, %s175
      %p182 = scmp.eq.s32.totalorder %s29, 1
      %p183 = por %p181, %p182
      %p184 = scmp.ne.s32.totalorder %s175, %s176
      %p185 = scmp.eq.s32.totalorder %s29, 0
      %p186 = por %p184, %p185
      %p187 = scmp.ne.s32.totalorder %s175, %s176
      %p188 = scmp.eq.s32.totalorder %s30, 1
      %p189 = por %p187, %p188
      %p191 = scmp.ne.s32.totalorder %s176, %s190
      %p192 = scmp.eq.s32.totalorder %s30, 0
      %p193 = por %p191, %p192
      %s195 = sadd.s32 %s194, 1
      %p198 = scmp.eq.s32.totalorder %s24, 1
      %p199 = scmp.ne.s32.totalorder %s194, %s196
      %p200 = scmp.eq.s32.totalorder %s24, 0
      %p201 = por %p199, %p200
      %p202 = scmp.ne.s32.totalorder %s194, %s196
      %p203 = scmp.eq.s32.totalorder %s29, 1
      %p204 = por %p202, %p203
      %p205 = scmp.ne.s32.totalorder %s196, %s197
      %p206 = scmp.eq.s32.totalorder %s29, 0
      %p207 = por %p205, %p206
      %p208 = scmp.ne.s32.totalorder %s196, %s197
      %p209 = scmp.eq.s32.totalorder %s30, 1
      %p210 = por %p208, %p209
      %p212 = scmp.ne.s32.totalorder %s197, %s211
      %p213 = scmp.eq.s32.totalorder %s30, 0
      %p214 = por %p212, %p213
      %s216 = sadd.s32 %s215, 1
      %p219 = scmp.eq.s32.totalorder %s24, 1
      %p220 = scmp.ne.s32.totalorder %s215, %s217
      %p221 = scmp.eq.s32.totalorder %s24, 0
      %p222 = por %p220, %p221
      %p223 = scmp.ne.s32.totalorder %s215, %s217
      %p224 = scmp.eq.s32.totalorder %s29, 1
      %p225 = por %p223, %p224
      %p226 = scmp.ne.s32.totalorder %s217, %s218
      %p227 = scmp.eq.s32.totalorder %s29, 0
      %p228 = por %p226, %p227
      %p229 = scmp.ne.s32.totalorder %s217, %s218
      %p230 = scmp.eq.s32.totalorder %s30, 1
      %p231 = por %p229, %p230
      %p233 = scmp.ne.s32.totalorder %s218, %s232
      %p234 = scmp.eq.s32.totalorder %s30, 0
      %p235 = por %p233, %p234
      %s237 = sadd.s32 %s236, 1
      %p240 = scmp.eq.s32.totalorder %s24, 1
      %p241 = scmp.ne.s32.totalorder %s236, %s238
      %p242 = scmp.eq.s32.totalorder %s24, 0
      %p243 = por %p241, %p242
      %p244 = scmp.ne.s32.totalorder %s236, %s238
      %p245 = scmp.eq.s32.totalorder %s29, 1
      %p246 = por %p244, %p245
      %p247 = scmp.ne.s32.totalorder %s238, %s239
      %p248 = scmp.eq.s32.totalorder %s29, 0
      %p249 = por %p247, %p248
      %p250 = scmp.ne.s32.totalorder %s238, %s239
      %p251 = scmp.eq.s32.totalorder %s30, 1
      %p252 = por %p250, %p251
      %p254 = scmp.ne.s32.totalorder %s239, %s253
      %p255 = scmp.eq.s32.totalorder %s30, 0
      %p256 = por %p254, %p255
      %s258 = sadd.s32 %s257, 1
      %p261 = scmp.eq.s32.totalorder %s24, 1
      %p262 = scmp.ne.s32.totalorder %s257, %s259
      %p263 = scmp.eq.s32.totalorder %s24, 0
      %p264 = por %p262, %p263
      %p265 = scmp.ne.s32.totalorder %s257, %s259
      %p266 = scmp.eq.s32.totalorder %s29, 1
      %p267 = por %p265, %p266
      %p268 = scmp.ne.s32.totalorder %s259, %s260
      %p269 = scmp.eq.s32.totalorder %s29, 0
      %p270 = por %p268, %p269
      %p271 = scmp.ne.s32.totalorder %s259, %s260
      %p272 = scmp.eq.s32.totalorder %s30, 1
      %p273 = por %p271, %p272
      %p275 = scmp.ne.s32.totalorder %s260, %s274
      %p276 = scmp.eq.s32.totalorder %s30, 0
      %p277 = por %p275, %p276
      %s279 = sadd.s32 %s278, 1
      %p282 = scmp.eq.s32.totalorder %s24, 1
      %p283 = scmp.ne.s32.totalorder %s278, %s280
      %p284 = scmp.eq.s32.totalorder %s24, 0
      %p285 = por %p283, %p284
      %p286 = scmp.ne.s32.totalorder %s278, %s280
      %p287 = scmp.eq.s32.totalorder %s29, 1
      %p288 = por %p286, %p287
      %p289 = scmp.ne.s32.totalorder %s280, %s281
      %p290 = scmp.eq.s32.totalorder %s29, 0
      %p291 = por %p289, %p290
      %p292 = scmp.ne.s32.totalorder %s280, %s281
      %p293 = scmp.eq.s32.totalorder %s30, 1
      %p294 = por %p292, %p293
      %p296 = scmp.ne.s32.totalorder %s281, %s295
      %p297 = scmp.eq.s32.totalorder %s30, 0
      %p298 = por %p296, %p297
      %s300 = sadd.s32 %s299, 1
      %p303 = scmp.eq.s32.totalorder %s24, 1
      %p304 = scmp.ne.s32.totalorder %s299, %s301
      %p305 = scmp.eq.s32.totalorder %s24, 0
      %p306 = por %p304, %p305
      %p307 = scmp.ne.s32.totalorder %s299, %s301
      %p308 = scmp.eq.s32.totalorder %s29, 1
      %p309 = por %p307, %p308
      %p310 = scmp.ne.s32.totalorder %s301, %s302
      %p311 = scmp.eq.s32.totalorder %s29, 0
      %p312 = por %p310, %p311
      %p313 = scmp.ne.s32.totalorder %s301, %s302
      %p314 = scmp.eq.s32.totalorder %s30, 1
      %p315 = por %p313, %p314
      %p317 = scmp.ne.s32.totalorder %s302, %s316
      %p318 = scmp.eq.s32.totalorder %s30, 0
      %p319 = por %p317, %p318
      %s321 = sadd.s32 %s320, 1
      %p324 = scmp.eq.s32.totalorder %s24, 1
      %p325 = scmp.ne.s32.totalorder %s320, %s322
      %p326 = scmp.eq.s32.totalorder %s24, 0
      %p327 = por %p325, %p326
      %p328 = scmp.ne.s32.totalorder %s320, %s322
      %p329 = scmp.eq.s32.totalorder %s29, 1
      %p330 = por %p328, %p329
      %p331 = scmp.ne.s32.totalorder %s322, %s323
      %p332 = scmp.eq.s32.totalorder %s29, 0
      %p333 = por %p331, %p332
      %p334 = scmp.ne.s32.totalorder %s322, %s323
      %p335 = scmp.eq.s32.totalorder %s30, 1
      %p336 = por %p334, %p335
      %p338 = scmp.ne.s32.totalorder %s323, %s337
      %p339 = scmp.eq.s32.totalorder %s30, 0
      %p340 = por %p338, %p339
      %s342 = sadd.s32 %s341, 1
      %p345 = scmp.eq.s32.totalorder %s24, 1
      %p346 = scmp.ne.s32.totalorder %s341, %s343
      %p347 = scmp.eq.s32.totalorder %s24, 0
      %p348 = por %p346, %p347
      %p349 = scmp.ne.s32.totalorder %s341, %s343
      %p350 = scmp.eq.s32.totalorder %s29, 1
      %p351 = por %p349, %p350
      %p352 = scmp.ne.s32.totalorder %s343, %s344
      %p353 = scmp.eq.s32.totalorder %s29, 0
      %p354 = por %p352, %p353
      %p355 = scmp.ne.s32.totalorder %s343, %s344
      %p356 = scmp.eq.s32.totalorder %s30, 1
      %p357 = por %p355, %p356
      %p359 = scmp.ne.s32.totalorder %s344, %s358
      %p360 = scmp.eq.s32.totalorder %s30, 0
      %p361 = por %p359, %p360
      %s362 = ssub.s32 %s24, %s31
      %p363 = scmp.eq.s32.totalorder %s362, 0
      %s365 = sadd.s32 %s364, 1
      %s366 = scalar_select %p363, %s364, %s365
      %p369 = pneg %p363
      %p370 = scmp.eq.s32.totalorder %s24, 1
      %p371 = por %p369, %p370
      %p372 = scmp.ne.s32.totalorder %s364, %s367
      %p373 = scmp.eq.s32.totalorder %s24, 0
      %p374 = por %p372, %p373
      %p375 = scmp.ne.s32.totalorder %s364, %s367
      %p376 = scmp.eq.s32.totalorder %s29, 1
      %p377 = por %p375, %p376
      %p378 = scmp.ne.s32.totalorder %s367, %s368
      %p379 = scmp.eq.s32.totalorder %s29, 0
      %p380 = por %p378, %p379
      %p381 = scmp.ne.s32.totalorder %s367, %s368
      %p382 = scmp.eq.s32.totalorder %s30, 1
      %p383 = por %p381, %p382
      %p385 = scmp.ne.s32.totalorder %s368, %s384
      %p386 = scmp.eq.s32.totalorder %s30, 0
      %p387 = por %p385, %p386
      %p388 = scmp.le.s32.totalorder 1, %s24
      %p389 = scmp.lt.s32.totalorder %s24, 3
      %p390 = pnand %p388, %p389
      %p391 = pneg %p390
      // Predicated region
      $region9: #{tpu_custom_call.1} parent=5 // pred_check
        _
      $region10: #{tpu_custom_call.1} parent=5 // pred_check_branch
        %393 = sbr.rel (%p390) target = $region12
      $region11: #{tpu_custom_call.1} parent=5 // pred_region
        %s394 = ssub.s32 %s24, 1
        // Predicated region
        $region13: #{tpu_custom_call.1} parent=11 // pred_check
          %p395 = pneg %p123
        $region14: #{tpu_custom_call.1} parent=11 // pred_check_branch
          %397 = sbr.rel (%p395) target = $region16
        $region15: #{tpu_custom_call.1} parent=11 // pred_region
          _
        $region16: #{tpu_custom_call.1} parent=11 // pred_fallthru
          _
        // Predicated region
        $region17: #{tpu_custom_call.1} parent=11 // pred_check
          %p398 = pneg %p144
        $region18: #{tpu_custom_call.1} parent=11 // pred_check_branch
          %400 = sbr.rel (%p398) target = $region20
        $region19: #{tpu_custom_call.1} parent=11 // pred_region
          _
        $region20: #{tpu_custom_call.1} parent=11 // pred_fallthru
          _
        // Predicated region
        $region21: #{tpu_custom_call.1} parent=11 // pred_check
          %p401 = pneg %p165
        $region22: #{tpu_custom_call.1} parent=11 // pred_check_branch
          %403 = sbr.rel (%p401) target = $region24
        $region23: #{tpu_custom_call.1} parent=11 // pred_region
          _
        $region24: #{tpu_custom_call.1} parent=11 // pred_fallthru
          _
        // Predicated region
        $region25: #{tpu_custom_call.1} parent=11 // pred_check
          %p404 = pneg %p186
        $region26: #{tpu_custom_call.1} parent=11 // pred_check_branch
          %406 = sbr.rel (%p404) target = $region28
        $region27: #{tpu_custom_call.1} parent=11 // pred_region
          _
        $region28: #{tpu_custom_call.1} parent=11 // pred_fallthru
          _
        // Predicated region
        $region29: #{tpu_custom_call.1} parent=11 // pred_check
          %p407 = pneg %p207
        $region30: #{tpu_custom_call.1} parent=11 // pred_check_branch
          %409 = sbr.rel (%p407) target = $region32
        $region31: #{tpu_custom_call.1} parent=11 // pred_region
          _
        $region32: #{tpu_custom_call.1} parent=11 // pred_fallthru
          _
        // Predicated region
        $region33: #{tpu_custom_call.1} parent=11 // pred_check
          %p410 = pneg %p228
        $region34: #{tpu_custom_call.1} parent=11 // pred_check_branch
          %412 = sbr.rel (%p410) target = $region36
        $region35: #{tpu_custom_call.1} parent=11 // pred_region
          _
        $region36: #{tpu_custom_call.1} parent=11 // pred_fallthru
          _
        // Predicated region
        $region37: #{tpu_custom_call.1} parent=11 // pred_check
          %p413 = pneg %p249
        $region38: #{tpu_custom_call.1} parent=11 // pred_check_branch
          %415 = sbr.rel (%p413) target = $region40
        $region39: #{tpu_custom_call.1} parent=11 // pred_region
          _
        $region40: #{tpu_custom_call.1} parent=11 // pred_fallthru
          _
        // Predicated region
        $region41: #{tpu_custom_call.1} parent=11 // pred_check
          %p416 = pneg %p270
        $region42: #{tpu_custom_call.1} parent=11 // pred_check_branch
          %418 = sbr.rel (%p416) target = $region44
        $region43: #{tpu_custom_call.1} parent=11 // pred_region
          _
        $region44: #{tpu_custom_call.1} parent=11 // pred_fallthru
          _
        // Predicated region
        $region45: #{tpu_custom_call.1} parent=11 // pred_check
          %p419 = pneg %p291
        $region46: #{tpu_custom_call.1} parent=11 // pred_check_branch
          %421 = sbr.rel (%p419) target = $region48
        $region47: #{tpu_custom_call.1} parent=11 // pred_region
          _
        $region48: #{tpu_custom_call.1} parent=11 // pred_fallthru
          _
        // Predicated region
        $region49: #{tpu_custom_call.1} parent=11 // pred_check
          %p422 = pneg %p312
        $region50: #{tpu_custom_call.1} parent=11 // pred_check_branch
          %424 = sbr.rel (%p422) target = $region52
        $region51: #{tpu_custom_call.1} parent=11 // pred_region
          _
        $region52: #{tpu_custom_call.1} parent=11 // pred_fallthru
          _
        // Predicated region
        $region53: #{tpu_custom_call.1} parent=11 // pred_check
          %p425 = pneg %p333
        $region54: #{tpu_custom_call.1} parent=11 // pred_check_branch
          %427 = sbr.rel (%p425) target = $region56
        $region55: #{tpu_custom_call.1} parent=11 // pred_region
          _
        $region56: #{tpu_custom_call.1} parent=11 // pred_fallthru
          _
        // Predicated region
        $region57: #{tpu_custom_call.1} parent=11 // pred_check
          %p428 = pneg %p354
        $region58: #{tpu_custom_call.1} parent=11 // pred_check_branch
          %430 = sbr.rel (%p428) target = $region60
        $region59: #{tpu_custom_call.1} parent=11 // pred_region
          _
        $region60: #{tpu_custom_call.1} parent=11 // pred_fallthru
          _
      $region12: #{tpu_custom_call.1} parent=5 // pred_fallthru
        _
      %p431 = scmp.lt.s32.totalorder %s24, 2
      // Predicated region
      $region61: #{tpu_custom_call.1} parent=5 // pred_check
        %p432 = pneg %p431
      $region62: #{tpu_custom_call.1} parent=5 // pred_check_branch
        %434 = sbr.rel (%p432) target = $region64
      $region63: #{tpu_custom_call.1} parent=5 // pred_region
        // Predicated region
        $region65: #{tpu_custom_call.1} parent=63 // pred_check
          %p435 = pneg %p44
        $region66: #{tpu_custom_call.1} parent=63 // pred_check_branch
          %437 = sbr.rel (%p435) target = $region68
        $region67: #{tpu_custom_call.1} parent=63 // pred_region
          %p438 = scmp.lt.s32.totalorder %s24, 1
          %s439 = scalar_select %p438, %s24, 1
          %s440 = smul.addr %s439, 4
          %s441 = scalar_lea.vmem %s0, %s440
        $region68: #{tpu_custom_call.1} parent=63 // pred_fallthru
          _
        // Predicated region
        $region69: #{tpu_custom_call.1} parent=63 // pred_check
          %p442 = pneg %p70
        $region70: #{tpu_custom_call.1} parent=63 // pred_check_branch
          %444 = sbr.rel (%p442) target = $region72
        $region71: #{tpu_custom_call.1} parent=63 // pred_region
          %p445 = scmp.lt.s32.totalorder %s24, 1
          %s446 = scalar_select %p445, %s24, 1
          %s447 = smul.addr %s446, 4
          %s448 = scalar_lea.vmem %s1, %s447
        $region72: #{tpu_custom_call.1} parent=63 // pred_fallthru
          _
        // Predicated region
        $region73: #{tpu_custom_call.1} parent=63 // pred_check
          %p449 = pneg %p96
        $region74: #{tpu_custom_call.1} parent=63 // pred_check_branch
          %451 = sbr.rel (%p449) target = $region76
        $region75: #{tpu_custom_call.1} parent=63 // pred_region
          %p452 = scmp.lt.s32.totalorder %s24, 1
          %s453 = scalar_select %p452, %s24, 1
          %s454 = smul.addr %s453, 8
          %s455 = scalar_lea.vmem %s2, %s454
        $region76: #{tpu_custom_call.1} parent=63 // pred_fallthru
          _
      $region64: #{tpu_custom_call.1} parent=5 // pred_fallthru
        _
      %p456 = scmp.le.s32.totalorder 1, %s24
      %p457 = scmp.lt.s32.totalorder %s24, 3
      %p458 = pnand %p456, %p457
      %p459 = pneg %p458
      // Predicated region
      $region77: #{tpu_custom_call.1} parent=5 // pred_check
        _
      $region78: #{tpu_custom_call.1} parent=5 // pred_check_branch
        %461 = sbr.rel (%p458) target = $region80
      $region79: #{tpu_custom_call.1} parent=5 // pred_region
        %s462 = ssub.s32 %s24, 1
        %p463 = scmp.lt.s32.totalorder %s29, 1
        %s464 = scalar_select %p463, %s29, 1
        %s465 = smul.addr %s464, 4
        %s466 = scalar_lea.vmem %s0, %s465
        %p467 = pneg %p50
        %p468 = pneg %p47
        %p469 = scmp.lt.s32.totalorder %s29, 1
        %s470 = scalar_select %p469, %s29, 1
        %s471 = smul.addr %s470, 4
        %s472 = scalar_lea.vmem %s1, %s471
        %p473 = pneg %p76
        %p474 = pneg %p73
        %p475 = scmp.lt.s32.totalorder %s29, 1
        %s476 = scalar_select %p475, %s29, 1
        %s477 = smul.addr %s476, 8
        %s478 = scalar_lea.vmem %s2, %s477
        %p479 = pneg %p102
        %p480 = pneg %p99
        %p481 = pneg %p123
        %p482 = pneg %p120
        %p483 = pneg %p144
        %p484 = pneg %p141
        %p485 = pneg %p165
        %p486 = pneg %p162
        %p487 = pneg %p186
        %p488 = pneg %p183
        %p489 = pneg %p207
        %p490 = pneg %p204
        %p491 = pneg %p228
        %p492 = pneg %p225
        %p493 = pneg %p249
        %p494 = pneg %p246
        %p495 = pneg %p270
        %p496 = pneg %p267
        %p497 = pneg %p291
        %p498 = pneg %p288
        %p499 = pneg %p312
        %p500 = pneg %p309
        %p501 = pneg %p333
        %p502 = pneg %p330
        %p503 = pneg %p354
        %p504 = pneg %p351
        %p505 = pneg %p380
        %p506 = pneg %p377
        %s507 = sand.u32 %s367, 1
        %s508 = scalar_lea.sflag [#allocation4], %s507
        %s509 = sand.u32 %s367, 1
        %s510 = smul.addr %s509, 8
        %s511 = scalar_lea.vmem [#allocation3], %s510
        %p512 = scmp.lt.s32.totalorder %s29, 1
        %s513 = scalar_select %p512, %s29, 1
        %s514 = smul.addr %s513, 4
        %s515 = scalar_lea.vmem %s0, %s514
        %p516 = scmp.lt.s32.totalorder %s29, 1
        %s517 = scalar_select %p516, %s29, 1
        %s518 = smul.addr %s517, 4
        %s519 = scalar_lea.vmem %s1, %s518
        %p520 = scmp.lt.s32.totalorder %s29, 1
        %s521 = scalar_select %p520, %s29, 1
        %s522 = smul.addr %s521, 8
        %s523 = scalar_lea.vmem %s2, %s522
        %v525 = vld [vmem:[%s515] sm:$0xf]
        %v526 = vld [vmem:[%s519] sm:$0xf]
        %v527 = vld [vmem:[%s523] sm:$0xff]
        %v528 = vld [vmem:[%s4] sm:$0x1]
        %v529 = vld [vmem:[%s3] sm:$0xf]
        %v530 = vld [vmem:[%s3 + $0x4] sm:$0xf]
        %v531 = vld [vmem:[%s3 + $0x8] sm:$0xf]
        %v532 = vld [vmem:[%s3 + $0xc] sm:$0xf]
        %v533 = vld [vmem:[%s3 + $0x10] sm:$0xf]
        %v534 = vld [vmem:[%s3 + $0x14] sm:$0xf]
        %v535 = vld [vmem:[%s3 + $0x18] sm:$0xf]
        %v536 = vld [vmem:[%s3 + $0x1c] sm:$0xf]
        %v537 = vld [vmem:[%s3 + $0x20] sm:$0xf]
        %v538 = vld [vmem:[%s3 + $0x24] sm:$0xf]
        %v539 = vld [vmem:[%s3 + $0x28] sm:$0xf]
        %v540 = vld [vmem:[%s3 + $0x2c] sm:$0xf]
        %v542 = vperm.slane %v528, 0
        %v548 = vunpack.c.l.b16 %v529
        %v549 = vunpack.c.l.b16 %v530
        %v550 = vunpack.c.l.b16 %v531
        %v551 = vunpack.c.l.b16 %v532
        %v552 = vpack.c.b16 %v549, %v548
        %v553 = vpack.c.b16 %v551, %v550
        %vm554 = vcmask 261120
        %v556 = vsel %vm554, %v525, 0
        %v559 = vsel %vm554, %v552, 0
        %v562 = vsel %vm554, %v553, 0
        %564 = vmatpush.bf16.xpose.msra.mxu0 0
        %565 = vmatpush.bf16.xpose.msra.mxu0 0
        %566 = vmatpush.bf16.xpose.msra.mxu0 0
        %567 = vmatpush.bf16.xpose.msra.mxu0 0
        %568 = vmatpush.bf16.xpose.msra.mxu0 0
        %569 = vmatpush.bf16.xpose.msra.mxu0 0
        %570 = vmatpush.bf16.xpose.msra.mxu0 %v562
        %571 = vmatpush.bf16.xpose.msra.mxu0 %v559
        %572 = vmatmul.bf16.gmra.mxu0 %v556
        %v573 = vpop.f32.mrf.mxu0
        %v574 = vadd.f32 %v542, %v573
        %v575 = vpop.f32.mrf.mxu0
        %576 = vdwg.mxu0
        %v581 = vunpack.c.l.b16 %v533
        %v582 = vunpack.c.l.b16 %v534
        %v583 = vunpack.c.l.b16 %v535
        %v584 = vunpack.c.l.b16 %v536
        %v585 = vpack.c.b16 %v582, %v581
        %v586 = vpack.c.b16 %v584, %v583
        %587 = vrot.lane.b32.xlu0 %v542, 96
        %v588 = vpop.permute.xlu0 %587
        %v591 = vsel %vm554, %v526, 0
        %v594 = vsel %vm554, %v585, 0
        %v597 = vsel %vm554, %v586, 0
        %599 = vmatpush.bf16.xpose.msra.mxu0 0
        %600 = vmatpush.bf16.xpose.msra.mxu0 0
        %601 = vmatpush.bf16.xpose.msra.mxu0 0
        %602 = vmatpush.bf16.xpose.msra.mxu0 0
        %603 = vmatpush.bf16.xpose.msra.mxu0 0
        %604 = vmatpush.bf16.xpose.msra.mxu0 0
        %605 = vmatpush.bf16.xpose.msra.mxu0 %v597
        %606 = vmatpush.bf16.xpose.msra.mxu0 %v594
        %607 = vmatmul.bf16.gmra.mxu0 %v591
        %v608 = vpop.f32.mrf.mxu0
        %v609 = vadd.f32 %v588, %v608
        %v610 = vpop.f32.mrf.mxu0
        %611 = vdwg.mxu0
        %v612 = vpack.c.bf16 %v527, %v527
        %v617 = vunpack.c.l.b16 %v537
        %v618 = vunpack.c.l.b16 %v538
        %v619 = vunpack.c.l.b16 %v539
        %v620 = vunpack.c.l.b16 %v540
        %v621 = vpack.c.b16 %v618, %v617
        %v622 = vpack.c.b16 %v620, %v619
        %623 = vrot.lane.b32.xlu0 %v542, 64
        %v624 = vpop.permute.xlu0 %623
        %v627 = vsel %vm554, %v612, 0
        %v630 = vsel %vm554, %v621, 0
        %v633 = vsel %vm554, %v622, 0
        %635 = vmatpush.bf16.xpose.msra.mxu0 0
        %636 = vmatpush.bf16.xpose.msra.mxu0 0
        %637 = vmatpush.bf16.xpose.msra.mxu0 0
        %638 = vmatpush.bf16.xpose.msra.mxu0 0
        %639 = vmatpush.bf16.xpose.msra.mxu0 0
        %640 = vmatpush.bf16.xpose.msra.mxu0 0
        %641 = vmatpush.bf16.xpose.msra.mxu0 %v633
        %642 = vmatpush.bf16.xpose.msra.mxu0 %v630
        %643 = vmatmul.bf16.gmra.mxu0 %v627
        %v644 = vpop.f32.mrf.mxu0
        %v645 = vadd.f32 %v624, %v644
        %v646 = vpop.f32.mrf.mxu0
        %647 = vdwg.mxu0
        %v648 = vmul.f32 %v574, 0.35355338
        %v649 = vpack.c.bf16 %v648, %v648
        %v650 = vpack.c.bf16 %v609, %v609
        %v651 = vpack.c.bf16 %v645, %v645
        %vm652 = vcmask 64512
        %v654 = vsel %vm652, %v649, 0
        %v657 = vsel %vm652, %v650, 0
        %659 = vmatpush.bf16.xpose.msra.mxu0 0
        %660 = vmatpush.bf16.xpose.msra.mxu0 0
        %661 = vmatpush.bf16.xpose.msra.mxu0 0
        %662 = vmatpush.bf16.xpose.msra.mxu0 0
        %663 = vmatpush.bf16.xpose.msra.mxu0 0
        %664 = vmatpush.bf16.xpose.msra.mxu0 0
        %665 = vmatpush.bf16.xpose.msra.mxu0 0
        %666 = vmatpush.bf16.xpose.msra.mxu0 %v657
        %667 = vmatmul.bf16.gmra.mxu0 %v654
        %v668 = vpop.f32.mrf.mxu0
        %v669 = vadd.f32 0.0, %v668
        %v670 = vpop.f32.mrf.mxu0
        %671 = vdwg.mxu0
        %v672 = vsel %vm652, %v669, -inf
        %673 = vmax.xlane.f32.xlu0 %v672
        %v674 = vpop.xlane.xlu0 %673
        %v675 = vsub.f32 %v669, %v674
        %v676 = vmul.f32 %v675, 1.442695
        %v677 = vpow.pop %v676
        %v678 = vsel %vm652, %v677, 0.0
        %679 = vadd.xlane.f32.xlu0 %v678
        %v680 = vpop.xlane.xlu0 %679
        %v681 = vrcp.pop %v680
        %v682 = vmul.f32 %v677, %v681
        %v683 = vpack.c.bf16 %v682, %v682
        %v685 = vsel %vm652, %v683, 0
        %vm687 = vcmask 1043456
        %v689 = vsel %vm687, %v651, 0
        %691 = vmatpush.bf16.msra.mxu0 0
        %692 = vmatpush.bf16.msra.mxu0 0
        %693 = vmatpush.bf16.msra.mxu0 0
        %694 = vmatpush.bf16.msra.mxu0 0
        %695 = vmatpush.bf16.msra.mxu0 0
        %696 = vmatpush.bf16.msra.mxu0 0
        %697 = vmatpush.bf16.msra.mxu0 0
        %698 = vmatpush.bf16.msra.mxu0 %v689
        %699 = vmatmul.bf16.gmra.mxu0 %v685
        %v700 = vpop.f32.mrf.mxu0
        %v701 = vadd.f32 0.0, %v700
        %v702 = vpop.f32.mrf.mxu0
        %703 = vdwg.mxu0
        %704 = vst.msk [vmem:[#allocation2] sm:$0xff] %vm652, %v701
        %v706 = vunpack.c.l.b16 %v649
        %v707 = vpack.c.b16 %v706, %v706
        %708 = vrot.lane.b32.xlu0 %v707, 120
        %v709 = vpop.permute.xlu0 %708
        %v711 = vunpack.c.l.b16 %v650
        %v712 = vpack.c.b16 %v711, %v711
        %713 = vrot.lane.b32.xlu0 %v712, 120
        %v714 = vpop.permute.xlu0 %713
        %v716 = vsel %vm652, %v709, 0
        %v719 = vsel %vm652, %v714, 0
        %721 = vmatpush.bf16.xpose.msra.mxu0 0
        %722 = vmatpush.bf16.xpose.msra.mxu0 0
        %723 = vmatpush.bf16.xpose.msra.mxu0 0
        %724 = vmatpush.bf16.xpose.msra.mxu0 0
        %725 = vmatpush.bf16.xpose.msra.mxu0 0
        %726 = vmatpush.bf16.xpose.msra.mxu0 0
        %727 = vmatpush.bf16.xpose.msra.mxu0 0
        %728 = vmatpush.bf16.xpose.msra.mxu0 %v719
        %729 = vmatmul.bf16.gmra.mxu0 %v716
        %v730 = vpop.f32.mrf.mxu0
        %v731 = vadd.f32 0.0, %v730
        %v732 = vpop.f32.mrf.mxu0
        %733 = vdwg.mxu0
        %v734 = vsel %vm652, %v731, -inf
        %735 = vmax.xlane.f32.xlu0 %v734
        %v736 = vpop.xlane.xlu0 %735
        %v737 = vsub.f32 %v731, %v736
        %v738 = vmul.f32 %v737, 1.442695
        %v739 = vpow.pop %v738
        %v740 = vsel %vm652, %v739, 0.0
        %741 = vadd.xlane.f32.xlu0 %v740
        %v742 = vpop.xlane.xlu0 %741
        %v743 = vrcp.pop %v742
        %v744 = vmul.f32 %v739, %v743
        %v745 = vpack.c.bf16 %v744, %v744
        %v747 = vunpack.c.l.b16 %v651
        %v748 = vpack.c.b16 %v747, %v747
        %749 = vrot.lane.b32.xlu0 %v748, 120
        %v750 = vpop.permute.xlu0 %749
        %v752 = vsel %vm652, %v745, 0
        %v755 = vsel %vm687, %v750, 0
        %757 = vmatpush.bf16.msra.mxu0 0
        %758 = vmatpush.bf16.msra.mxu0 0
        %759 = vmatpush.bf16.msra.mxu0 0
        %760 = vmatpush.bf16.msra.mxu0 0
        %761 = vmatpush.bf16.msra.mxu0 0
        %762 = vmatpush.bf16.msra.mxu0 0
        %763 = vmatpush.bf16.msra.mxu0 0
        %764 = vmatpush.bf16.msra.mxu0 %v755
        %765 = vmatmul.bf16.gmra.mxu0 %v752
        %v766 = vpop.f32.mrf.mxu0
        %v767 = vadd.f32 0.0, %v766
        %v768 = vpop.f32.mrf.mxu0
        %769 = vdwg.mxu0
        %771 = vrot.lane.b32.xlu0 %v767, 8
        %v772 = vpop.permute.xlu0 %771
        %vm774 = vcmask 130112
        %775 = vst.msk [vmem:[#allocation2] sm:$0xff] %vm774, %v772
        %776 = vrot.lane.b32.xlu0 %v707, 112
        %v777 = vpop.permute.xlu0 %776
        %778 = vrot.lane.b32.xlu0 %v712, 112
        %v779 = vpop.permute.xlu0 %778
        %v781 = vsel %vm652, %v777, 0
        %v784 = vsel %vm652, %v779, 0
        %786 = vmatpush.bf16.xpose.msra.mxu0 0
        %787 = vmatpush.bf16.xpose.msra.mxu0 0
        %788 = vmatpush.bf16.xpose.msra.mxu0 0
        %789 = vmatpush.bf16.xpose.msra.mxu0 0
        %790 = vmatpush.bf16.xpose.msra.mxu0 0
        %791 = vmatpush.bf16.xpose.msra.mxu0 0
        %792 = vmatpush.bf16.xpose.msra.mxu0 0
        %793 = vmatpush.bf16.xpose.msra.mxu0 %v784
        %794 = vmatmul.bf16.gmra.mxu0 %v781
        %v795 = vpop.f32.mrf.mxu0
        %v796 = vadd.f32 0.0, %v795
        %v797 = vpop.f32.mrf.mxu0
        %798 = vdwg.mxu0
        %v799 = vsel %vm652, %v796, -inf
        %800 = vmax.xlane.f32.xlu0 %v799
        %v801 = vpop.xlane.xlu0 %800
        %v802 = vsub.f32 %v796, %v801
        %v803 = vmul.f32 %v802, 1.442695
        %v804 = vpow.pop %v803
        %v805 = vsel %vm652, %v804, 0.0
        %806 = vadd.xlane.f32.xlu0 %v805
        %v807 = vpop.xlane.xlu0 %806
        %v808 = vrcp.pop %v807
        %v809 = vmul.f32 %v804, %v808
        %v810 = vpack.c.bf16 %v809, %v809
        %811 = vrot.lane.b32.xlu0 %v748, 112
        %v812 = vpop.permute.xlu0 %811
        %v814 = vsel %vm652, %v810, 0
        %v817 = vsel %vm687, %v812, 0
        %819 = vmatpush.bf16.msra.mxu0 0
        %820 = vmatpush.bf16.msra.mxu0 0
        %821 = vmatpush.bf16.msra.mxu0 0
        %822 = vmatpush.bf16.msra.mxu0 0
        %823 = vmatpush.bf16.msra.mxu0 0
        %824 = vmatpush.bf16.msra.mxu0 0
        %825 = vmatpush.bf16.msra.mxu0 0
        %826 = vmatpush.bf16.msra.mxu0 %v817
        %827 = vmatmul.bf16.gmra.mxu0 %v814
        %v828 = vpop.f32.mrf.mxu0
        %v829 = vadd.f32 0.0, %v828
        %v830 = vpop.f32.mrf.mxu0
        %831 = vdwg.mxu0
        %833 = vrot.lane.b32.xlu0 %v829, 16
        %v834 = vpop.permute.xlu0 %833
        %vm836 = vcmask 195712
        %837 = vst.msk [vmem:[#allocation2] sm:$0xff] %vm836, %v834
        %838 = vrot.lane.b32.xlu0 %v707, 104
        %v839 = vpop.permute.xlu0 %838
        %840 = vrot.lane.b32.xlu0 %v712, 104
        %v841 = vpop.permute.xlu0 %840
        %v843 = vsel %vm652, %v839, 0
        %v846 = vsel %vm652, %v841, 0
        %848 = vmatpush.bf16.xpose.msra.mxu0 0
        %849 = vmatpush.bf16.xpose.msra.mxu0 0
        %850 = vmatpush.bf16.xpose.msra.mxu0 0
        %851 = vmatpush.bf16.xpose.msra.mxu0 0
        %852 = vmatpush.bf16.xpose.msra.mxu0 0
        %853 = vmatpush.bf16.xpose.msra.mxu0 0
        %854 = vmatpush.bf16.xpose.msra.mxu0 0
        %855 = vmatpush.bf16.xpose.msra.mxu0 %v846
        %856 = vmatmul.bf16.gmra.mxu0 %v843
        %v857 = vpop.f32.mrf.mxu0
        %v858 = vadd.f32 0.0, %v857
        %v859 = vpop.f32.mrf.mxu0
        %860 = vdwg.mxu0
        %v861 = vsel %vm652, %v858, -inf
        %862 = vmax.xlane.f32.xlu0 %v861
        %v863 = vpop.xlane.xlu0 %862
        %v864 = vsub.f32 %v858, %v863
        %v865 = vmul.f32 %v864, 1.442695
        %v866 = vpow.pop %v865
        %v867 = vsel %vm652, %v866, 0.0
        %868 = vadd.xlane.f32.xlu0 %v867
        %v869 = vpop.xlane.xlu0 %868
        %v870 = vrcp.pop %v869
        %v871 = vmul.f32 %v866, %v870
        %v872 = vpack.c.bf16 %v871, %v871
        %873 = vrot.lane.b32.xlu0 %v748, 104
        %v874 = vpop.permute.xlu0 %873
        %v876 = vsel %vm652, %v872, 0
        %v879 = vsel %vm687, %v874, 0
        %881 = vmatpush.bf16.msra.mxu0 0
        %882 = vmatpush.bf16.msra.mxu0 0
        %883 = vmatpush.bf16.msra.mxu0 0
        %884 = vmatpush.bf16.msra.mxu0 0
        %885 = vmatpush.bf16.msra.mxu0 0
        %886 = vmatpush.bf16.msra.mxu0 0
        %887 = vmatpush.bf16.msra.mxu0 0
        %888 = vmatpush.bf16.msra.mxu0 %v879
        %889 = vmatmul.bf16.gmra.mxu0 %v876
        %v890 = vpop.f32.mrf.mxu0
        %v891 = vadd.f32 0.0, %v890
        %v892 = vpop.f32.mrf.mxu0
        %893 = vdwg.mxu0
        %895 = vrot.lane.b32.xlu0 %v891, 24
        %v896 = vpop.permute.xlu0 %895
        %vm898 = vcmask 261312
        %899 = vst.msk [vmem:[#allocation2] sm:$0xff] %vm898, %v896
        %v900 = vld [vmem:[#allocation2] sm:$0xff]
        %v901 = vpack.c.bf16 %v900, %v900
        %v902 = vld [vmem:[%s5] sm:$0xf]
        %v903 = vld [vmem:[%s5 + $0x4] sm:$0xf]
        %v904 = vld [vmem:[%s5 + $0x8] sm:$0xf]
        %v905 = vld [vmem:[%s5 + $0xc] sm:$0xf]
        %v906 = vld [vmem:[%s6] sm:$0x1]
        %v908 = vperm.slane %v906, 0
        %v914 = vunpack.c.l.b16 %v902
        %v915 = vunpack.c.l.b16 %v903
        %v916 = vunpack.c.l.b16 %v904
        %v917 = vunpack.c.l.b16 %v905
        %v918 = vpack.c.b16 %v915, %v914
        %v919 = vpack.c.b16 %v917, %v916
        %v921 = vsel %vm554, %v901, 0
        %v924 = vsel %vm554, %v918, 0
        %v927 = vsel %vm554, %v919, 0
        %929 = vmatpush.bf16.xpose.msra.mxu0 0
        %930 = vmatpush.bf16.xpose.msra.mxu0 0
        %931 = vmatpush.bf16.xpose.msra.mxu0 0
        %932 = vmatpush.bf16.xpose.msra.mxu0 0
        %933 = vmatpush.bf16.xpose.msra.mxu0 0
        %934 = vmatpush.bf16.xpose.msra.mxu0 0
        %935 = vmatpush.bf16.xpose.msra.mxu0 %v927
        %936 = vmatpush.bf16.xpose.msra.mxu0 %v924
        %937 = vmatmul.bf16.gmra.mxu0 %v921
        %v938 = vpop.f32.mrf.mxu0
        %v939 = vadd.f32 %v908, %v938
        %v940 = vpop.f32.mrf.mxu0
        %941 = vdwg.mxu0
        %v942 = vadd.f32 %v939, %v527
        %v943 = vld [vmem:[%s7] sm:$0x1]
        %v944 = vld [vmem:[%s8] sm:$0x1]
        %v945 = vsel %vm554, %v942, 0.0
        %946 = vadd.xlane.f32.xlu0 %v945
        %v947 = vpop.xlane.xlu0 %946
        %v948 = vrcp.pop 32.0
        %v949 = vmul.f32 32.0, %v948
        %v950 = vsub.f32 1.0, %v949
        %v951 = vmul.f32 %v948, %v950
        %v952 = vadd.f32 %v948, %v951
        %vm953 = vweird.f32 %v948
        %v954 = vsel %vm953, %v948, %v952
        %v955 = vmul.f32 %v947, %v954
        %v956 = vsub.f32 %v942, %v955
        %v957 = vmul.f32 %v956, %v956
        %v958 = vsel %vm554, %v957, 0.0
        %959 = vadd.xlane.f32.xlu0 %v958
        %v960 = vpop.xlane.xlu0 %959
        %v961 = vmul.f32 %v960, %v954
        %v962 = vadd.f32 %v961, 1e-05
        %v963 = vrsqrt.pop %v962
        %v964 = vmul.f32 %v963, %v962
        %v965 = vmul.f32 %v964, %v963
        %v966 = vmul.f32 0.5, %v965
        %v967 = vsub.f32 1.5, %v966
        %v968 = vmul.f32 %v963, %v967
        %vm969 = vweird.f32 %v962
        %vm970 = vweird.f32 %v963
        %vm971 = vmor %vm969, %vm970
        %v972 = vsel %vm971, %v963, %v968
        %v973 = vmul.f32 %v956, %v972
        %v975 = vperm.slane %v943, 0
        %v977 = vmul.f32 %v973, %v975
        %v979 = vperm.slane %v944, 0
        %v981 = vadd.f32 %v977, %v979
        %v982 = vpack.c.bf16 %v981, %v981
        %v983 = vld [vmem:[%s11] sm:$0xf]
        %v984 = vld [vmem:[%s11 + $0x4] sm:$0xf]
        %v985 = vld [vmem:[%s11 + $0x8] sm:$0xf]
        %v986 = vld [vmem:[%s11 + $0xc] sm:$0xf]
        %v987 = vld [vmem:[%s11 + $0x10] sm:$0xf]
        %v988 = vld [vmem:[%s11 + $0x14] sm:$0xf]
        %v989 = vld [vmem:[%s11 + $0x18] sm:$0xf]
        %v990 = vld [vmem:[%s11 + $0x1c] sm:$0xf]
        %v991 = vld [vmem:[%s11 + $0x20] sm:$0xf]
        %v992 = vld [vmem:[%s11 + $0x24] sm:$0xf]
        %v993 = vld [vmem:[%s11 + $0x28] sm:$0xf]
        %v994 = vld [vmem:[%s11 + $0x2c] sm:$0xf]
        %v995 = vld [vmem:[%s11 + $0x30] sm:$0xf]
        %v996 = vld [vmem:[%s11 + $0x34] sm:$0xf]
        %v997 = vld [vmem:[%s11 + $0x38] sm:$0xf]
        %v998 = vld [vmem:[%s11 + $0x3c] sm:$0xf]
        %v999 = vld [vmem:[%s12] sm:$0x1]
        %v1001 = vperm.slane %v999, 0
        %v1019 = vunpack.c.l.b16 %v983
        %v1020 = vunpack.c.l.b16 %v984
        %v1021 = vunpack.c.l.b16 %v985
        %v1022 = vunpack.c.l.b16 %v986
        %v1023 = vunpack.c.l.b16 %v987
        %v1024 = vunpack.c.l.b16 %v988
        %v1025 = vunpack.c.l.b16 %v989
        %v1026 = vunpack.c.l.b16 %v990
        %v1027 = vunpack.c.l.b16 %v991
        %v1028 = vunpack.c.l.b16 %v992
        %v1029 = vunpack.c.l.b16 %v993
        %v1030 = vunpack.c.l.b16 %v994
        %v1031 = vunpack.c.l.b16 %v995
        %v1032 = vunpack.c.l.b16 %v996
        %v1033 = vunpack.c.l.b16 %v997
        %v1034 = vunpack.c.l.b16 %v998
        %v1035 = vpack.c.b16 %v1020, %v1019
        %v1036 = vpack.c.b16 %v1022, %v1021
        %v1037 = vpack.c.b16 %v1024, %v1023
        %v1038 = vpack.c.b16 %v1026, %v1025
        %v1039 = vpack.c.b16 %v1028, %v1027
        %v1040 = vpack.c.b16 %v1030, %v1029
        %v1041 = vpack.c.b16 %v1032, %v1031
        %v1042 = vpack.c.b16 %v1034, %v1033
        %v1044 = vsel %vm554, %v982, 0
        %v1047 = vsel %vm554, %v1035, 0
        %v1050 = vsel %vm554, %v1036, 0
        %v1053 = vsel %vm554, %v1037, 0
        %v1056 = vsel %vm554, %v1038, 0
        %v1059 = vsel %vm554, %v1039, 0
        %v1062 = vsel %vm554, %v1040, 0
        %v1065 = vsel %vm554, %v1041, 0
        %v1068 = vsel %vm554, %v1042, 0
        %1070 = vmatpush.bf16.xpose.msra.mxu0 %v1068
        %1071 = vmatpush.bf16.xpose.msra.mxu0 %v1065
        %1072 = vmatpush.bf16.xpose.msra.mxu0 %v1062
        %1073 = vmatpush.bf16.xpose.msra.mxu0 %v1059
        %1074 = vmatpush.bf16.xpose.msra.mxu0 %v1056
        %1075 = vmatpush.bf16.xpose.msra.mxu0 %v1053
        %1076 = vmatpush.bf16.xpose.msra.mxu0 %v1050
        %1077 = vmatpush.bf16.xpose.msra.mxu0 %v1047
        %1078 = vmatmul.bf16.gmra.mxu0 %v1044
        %v1079 = vpop.f32.mrf.mxu0
        %v1080 = vadd.f32 %v1001, %v1079
        %v1081 = vpop.f32.mrf.mxu0
        %1082 = vdwg.mxu0
        %v1083 = vmax.f32 %v1080, 0.0
        %v1084 = vpack.c.bf16 %v1083, %v1083
        %v1085 = vld [vmem:[%s13] sm:$0xf]
        %v1086 = vld [vmem:[%s13 + $0x4] sm:$0xf]
        %v1087 = vld [vmem:[%s13 + $0x8] sm:$0xf]
        %v1088 = vld [vmem:[%s13 + $0xc] sm:$0xf]
        %v1089 = vld [vmem:[%s14] sm:$0x1]
        %v1091 = vperm.slane %v1089, 0
        %v1097 = vunpack.c.l.b16 %v1085
        %v1098 = vunpack.c.l.b16 %v1086
        %v1099 = vunpack.c.l.b16 %v1087
        %v1100 = vunpack.c.l.b16 %v1088
        %v1101 = vpack.c.b16 %v1098, %v1097
        %v1102 = vpack.c.b16 %v1100, %v1099
        %1105 = vmatpush.bf16.xpose.msra.mxu0 0
        %1106 = vmatpush.bf16.xpose.msra.mxu0 0
        %1107 = vmatpush.bf16.xpose.msra.mxu0 0
        %1108 = vmatpush.bf16.xpose.msra.mxu0 0
        %1109 = vmatpush.bf16.xpose.msra.mxu0 0
        %1110 = vmatpush.bf16.xpose.msra.mxu0 0
        %1111 = vmatpush.bf16.xpose.msra.mxu0 %v1102
        %1112 = vmatpush.bf16.xpose.msra.mxu0 %v1101
        %1113 = vmatmul.bf16.gmra.mxu0 %v1084
        %v1114 = vpop.f32.mrf.mxu0
        %v1115 = vadd.f32 %v1091, %v1114
        %v1116 = vpop.f32.mrf.mxu0
        %1117 = vdwg.mxu0
        %v1118 = vadd.f32 %v1115, %v981
        %v1119 = vld [vmem:[%s9] sm:$0x1]
        %v1120 = vld [vmem:[%s10] sm:$0x1]
        %v1121 = vsel %vm554, %v1118, 0.0
        %1122 = vadd.xlane.f32.xlu0 %v1121
        %v1123 = vpop.xlane.xlu0 %1122
        %v1124 = vmul.f32 %v1123, %v954
        %v1125 = vsub.f32 %v1118, %v1124
        %v1126 = vmul.f32 %v1125, %v1125
        %v1127 = vsel %vm554, %v1126, 0.0
        %1128 = vadd.xlane.f32.xlu0 %v1127
        %v1129 = vpop.xlane.xlu0 %1128
        %v1130 = vmul.f32 %v1129, %v954
        %v1131 = vadd.f32 %v1130, 1e-05
        %v1132 = vrsqrt.pop %v1131
        %v1133 = vmul.f32 %v1132, %v1131
        %v1134 = vmul.f32 %v1133, %v1132
        %v1135 = vmul.f32 0.5, %v1134
        %v1136 = vsub.f32 1.5, %v1135
        %v1137 = vmul.f32 %v1132, %v1136
        %vm1138 = vweird.f32 %v1131
        %vm1139 = vweird.f32 %v1132
        %vm1140 = vmor %vm1138, %vm1139
        %v1141 = vsel %vm1140, %v1132, %v1137
        %v1142 = vmul.f32 %v1125, %v1141
        %v1144 = vperm.slane %v1119, 0
        %v1146 = vmul.f32 %v1142, %v1144
        %v1148 = vperm.slane %v1120, 0
        %v1150 = vadd.f32 %v1146, %v1148
        %1151 = vst.msk [vmem:[%s511] sm:$0xff] %vm554, %v1150
        %s1152 = sand.u32 %s367, 1
        %s1153 = scalar_lea.sflag [#allocation4], %s1152
        %s1154 = sand.u32 %s367, 1
        %s1155 = smul.addr %s1154, 8
        %s1156 = scalar_lea.vmem [#allocation3], %s1155
        // Predicated region
        $region81: #{tpu_custom_call.1} parent=79 // pred_check
          %p1157 = pneg %p377
        $region82: #{tpu_custom_call.1} parent=79 // pred_check_branch
          %1159 = sbr.rel (%p1157) target = $region84
        $region83: #{tpu_custom_call.1} parent=79 // pred_region
          %1161 = vsyncadd %s1153, 0
          %s1162 = smul.addr %s29, 8
          %s1163 = scalar_lea.hbm %s15, %s1162
          %s1165 = sshll.u32 %s1156, 4
          %s1166 = int_to_ptr.vmem [resolvable:$true] %s1165
          %s1167 = sshll.u32 %s1163, 4
          %s1168 = int_to_ptr.hbm [resolvable:$true] %s1167
          %1170 = dma.vmem_to_hbm [thread:$0]  %s1166, 128, %s1168, %s1153
        $region84: #{tpu_custom_call.1} parent=79 // pred_fallthru
          _
      $region80: #{tpu_custom_call.1} parent=5 // pred_fallthru
        _
      %p1171 = scmp.le.s32.totalorder 2, %s24
      // Predicated region
      $region85: #{tpu_custom_call.1} parent=5 // pred_check
        %p1172 = pneg %p1171
      $region86: #{tpu_custom_call.1} parent=5 // pred_check_branch
        %1174 = sbr.rel (%p1172) target = $region88
      $region87: #{tpu_custom_call.1} parent=5 // pred_region
        %s1175 = ssub.s32 %s24, 2
        // Predicated region
        $region89: #{tpu_custom_call.1} parent=87 // pred_check
          %p1176 = pneg %p383
        $region90: #{tpu_custom_call.1} parent=87 // pred_check_branch
          %1178 = sbr.rel (%p1176) target = $region92
        $region91: #{tpu_custom_call.1} parent=87 // pred_region
          %s1179 = sand.u32 %s368, 1
          %s1180 = scalar_lea.sflag [#allocation4], %s1179
          %s1181 = sand.u32 %s368, 1
          %s1182 = smul.addr %s1181, 8
          %s1183 = scalar_lea.vmem [#allocation3], %s1182
          %1185 = dma.done %s1180, 128
        $region92: #{tpu_custom_call.1} parent=87 // pred_fallthru
          _
      $region88: #{tpu_custom_call.1} parent=5 // pred_fallthru
        _
    $region6: #{tpu_custom_call.1} parent=1 // loop_footer
      %s28 = sadd.s32 1, %s24
    $region7: #{tpu_custom_call.1} parent=1 // loop_footer_branch
      %23 = sbr.rel target = $region3
    $region8: #{tpu_custom_call.1} parent=1 // loop_exit
      _
    %1186 = vsyncpa [#allocation4], 1
    %s1187 = scalar_lea.sflag [#allocation4], 1
    %1188 = vsyncpa %s1187, 1

</llo_original>
